<compile_context>
chip_gen: v7x
topology: tpu7x:2x2x1
jax: 0.10.0
libtpu: 0.0.40
codegen_flags: <defaults>
</compile_context>

<pallas_src>
import functools

import jax
import jax.numpy as jnp
from jax.experimental import pallas as pl
from jax.experimental.pallas import tpu as pltpu


def bottleneck_kernel(window_sizes, x_ref, *refs):
    """refs = (wd, bd, [wc_i, bc_i]*n, wu, bu, ln_g, ln_b, out_ref, t_scratch)."""
    n_conv = len(window_sizes)
    wd_ref, bd_ref = refs[0], refs[1]
    conv_refs = refs[2:2 + 2 * n_conv]
    wu_ref, bu_ref, g_ref, b_ref, out_ref, t_scr = refs[2 + 2 * n_conv:]

    x = x_ref[0]                                  # (L, d_model), f32
    L = x.shape[0]

    def mm(a, b):
        # bf16 MXU path with f32 accumulation.
        return jnp.dot(a.astype(jnp.bfloat16), b.astype(jnp.bfloat16),
                       preferred_element_type=jnp.float32)

    gamma = g_ref[...]                            # (1, d_model)
    beta = b_ref[...]                             # (1, d_model)

    def layer_norm(v, eps=1e-5):                  # torch nn.LayerNorm semantics
        mu = jnp.mean(v, axis=-1, keepdims=True)
        var = jnp.mean(jnp.square(v - mu), axis=-1, keepdims=True)
        return (v - mu) * jax.lax.rsqrt(var + eps) * gamma + beta

    # ---------------- down projection: (L, d_model) @ (d_model, d_inner) ----
    t = mm(x, wd_ref[...]) + bd_ref[...]          # (L, d_inner) f32
    t_scr[0:L, :] = t

    # ---------------- conv pyramid: Conv1d(k=ws, stride=ws) + folded BN + ELU
    coarse_blocks = []
    cur_len = L
    for i, ws in enumerate(window_sizes):
        w_ref = conv_refs[2 * i]                  # (ws*d_inner, d_inner), BN folded
        cb_ref = conv_refs[2 * i + 1]             # (1, d_inner), BN folded
        new_len = cur_len // ws
        # Gather the ws conv taps with strided sublane reads; lane-concat at
        # d_inner-aligned (128) boundaries so the conv is ONE matmul, K=ws*d_inner.
        taps = [t_scr[pl.ds(k, new_len, stride=ws), :] for k in range(ws)]
        tw = taps[0] if ws == 1 else jnp.concatenate(taps, axis=1)
        z = mm(tw, w_ref[...]) + cb_ref[...]      # conv + BN (folded)
        z = jnp.where(z > 0.0, z, jnp.exp(z) - 1.0)   # ELU (alpha=1)
        t_scr[0:new_len, :] = z                   # feed next pyramid level
        coarse_blocks.append(z)
        cur_len = new_len

    coarse = (coarse_blocks[0] if len(coarse_blocks) == 1
              else jnp.concatenate(coarse_blocks, axis=0))   # (Lc, d_inner)

    # ---------------- up projection + final LayerNorm + lane-dense stores ----
    up = mm(coarse, wu_ref[...]) + bu_ref[...]    # (Lc, d_model)
    out_ref[0, 0:L, :] = layer_norm(x)            # rows of the raw enc_input
    out_ref[0, L:, :] = layer_norm(up)            # rows of the coarse pyramid


def prepare_params(raw, window_sizes, bn_eps=1e-5):
    """Host-side prep: transpose Linear weights, fold eval-mode BN into conv."""
    p = {
        "wd": jnp.transpose(raw["down_w"]),       # (d_model, d_inner)
        "bd": raw["down_b"][None, :],
        "wu": jnp.transpose(raw["up_w"]),         # (d_inner, d_model)
        "bu": raw["up_b"][None, :],
        "ln_g": raw["ln_g"][None, :],
        "ln_b": raw["ln_b"][None, :],
        "conv": [],
    }
    for i, ws in enumerate(window_sizes):
        w = raw[f"conv_w{i}"]                     # torch layout (C_out, C_in, K)
        c_out, c_in, k = w.shape
        s = raw[f"bn_g{i}"] / jnp.sqrt(raw[f"bn_v{i}"] + bn_eps)
        shift = raw[f"bn_b{i}"] - raw[f"bn_m{i}"] * s
        # (C_out, C_in, K) -> (K, C_in, C_out) -> (K*C_in, C_out); matches the
        # tap-major lane concat inside the kernel.
        w_flat = jnp.transpose(w, (2, 1, 0)).reshape(k * c_in, c_out)
        p["conv"].append((w_flat * s[None, :],
                          (raw[f"conv_b{i}"] * s + shift)[None, :]))
    return p


def bottleneck_construct(x, p, window_sizes):
    """x: (B, L, d_model) f32. Returns LayerNorm([x ; up(pyramid)]) of shape
    (B, L + sum(L // prod(ws[:i+1])), d_model)."""
    B, L, d_model = x.shape
    d_inner = p["wd"].shape[1]

    lens = []
    cur = L
    for ws in window_sizes:
        cur = cur // ws
        lens.append(cur)
    Lc = sum(lens)
    L_out = L + Lc

    operands = [x, p["wd"], p["bd"]]
    for wc, bc in p["conv"]:
        operands += [wc, bc]
    operands += [p["wu"], p["bu"], p["ln_g"], p["ln_b"]]

    def full_spec(a):
        nd = a.ndim
        return pl.BlockSpec(a.shape, lambda b, _nd=nd: (0,) * _nd)

    in_specs = [pl.BlockSpec((1, L, d_model), lambda b: (b, 0, 0))]
    in_specs += [full_spec(a) for a in operands[1:]]
    out_specs = pl.BlockSpec((1, L_out, d_model), lambda b: (b, 0, 0))

    # Advisory cost estimate for the XLA scheduler.
    flops = 2 * B * L * d_model * d_inner                       # down
    trans = 0
    for ws, li in zip(window_sizes, lens):
        flops += 2 * B * li * (ws * d_inner) * d_inner          # conv i
        trans += B * li * d_inner                               # ELU exp
    flops += 2 * B * Lc * d_inner * d_model                     # up
    trans += B * L_out                                          # LN rsqrt
    bytes_accessed = 4 * (int(x.size)
                          + sum(int(a.size) for a in operands[1:])
                          + B * L_out * d_model)

    kernel = functools.partial(bottleneck_kernel, tuple(window_sizes))

    return pl.pallas_call(
        kernel,
        out_shape=jax.ShapeDtypeStruct((B, L_out, d_model), x.dtype),
        grid_spec=pltpu.PrefetchScalarGridSpec(
            num_scalar_prefetch=0,
            grid=(B,),
            in_specs=in_specs,
            out_specs=out_specs,
            scratch_shapes=[pltpu.VMEM((L, d_inner), jnp.float32)],
        ),
        compiler_params=pltpu.CompilerParams(
            dimension_semantics=("parallel",),
            vmem_limit_bytes=64 * 1024 * 1024),
        cost_estimate=pl.CostEstimate(
            flops=flops, transcendentals=trans, bytes_accessed=bytes_accessed),
    )(*operands)


def reference(x, raw, window_sizes, bn_eps=1e-5, ln_eps=1e-5):
    """Pure-JAX f32 reference mirroring the PyTorch forward (BN in eval mode)."""
    Bn = x.shape[0]
    t = x @ jnp.transpose(raw["down_w"]) + raw["down_b"]        # (B, L, d_inner)
    outs = []
    for i, ws in enumerate(window_sizes):
        Lc_, C = t.shape[1], t.shape[2]
        Li = Lc_ // ws
        xw = t[:, :Li * ws, :].reshape(Bn, Li, ws, C)
        z = jnp.einsum("blkc,ock->blo", xw, raw[f"conv_w{i}"]) + raw[f"conv_b{i}"]
        s = raw[f"bn_g{i}"] / jnp.sqrt(raw[f"bn_v{i}"] + bn_eps)
        z = (z - raw[f"bn_m{i}"]) * s + raw[f"bn_b{i}"]
        t = jnp.where(z > 0, z, jnp.expm1(z))                   # ELU
        outs.append(t)
    coarse = jnp.concatenate(outs, axis=1)
    up = coarse @ jnp.transpose(raw["up_w"]) + raw["up_b"]
    allx = jnp.concatenate([x, up], axis=1)
    mu = allx.mean(-1, keepdims=True)
    var = ((allx - mu) ** 2).mean(-1, keepdims=True)
    return (allx - mu) / jnp.sqrt(var + ln_eps) * raw["ln_g"] + raw["ln_b"]


if __name__ == "__main__":
    # Small, lane-aligned shapes: B=2, L=32, d_model=d_inner=128, window_size=2
    # (scalar window_size in the module -> 3 ConvLayers).
    B, L = 2, 32
    d_model, d_inner = 128, 128
    window_sizes = [2, 2, 2]
    n_conv = len(window_sizes)

    key = jax.random.PRNGKey(0)
    ks = iter(jax.random.split(key, 7 + 6 * n_conv))
    nxt = lambda: next(ks)

    raw = {
        "down_w": (1.0 / jnp.sqrt(d_model)) *
                  jax.random.normal(nxt(), (d_inner, d_model), jnp.float32),
        "down_b": 0.02 * jax.random.normal(nxt(), (d_inner,), jnp.float32),
    }
    for i, ws in enumerate(window_sizes):
        raw[f"conv_w{i}"] = (1.0 / jnp.sqrt(d_inner * ws)) * \
            jax.random.normal(nxt(), (d_inner, d_inner, ws), jnp.float32)
        raw[f"conv_b{i}"] = 0.02 * jax.random.normal(nxt(), (d_inner,), jnp.float32)
        raw[f"bn_g{i}"] = 1.0 + 0.1 * jax.random.normal(nxt(), (d_inner,), jnp.float32)
        raw[f"bn_b{i}"] = 0.02 * jax.random.normal(nxt(), (d_inner,), jnp.float32)
        raw[f"bn_m{i}"] = 0.05 * jax.random.normal(nxt(), (d_inner,), jnp.float32)
        raw[f"bn_v{i}"] = 0.5 + jax.random.uniform(nxt(), (d_inner,), jnp.float32)
    raw["up_w"] = (1.0 / jnp.sqrt(d_inner)) * \
        jax.random.normal(nxt(), (d_model, d_inner), jnp.float32)
    raw["up_b"] = 0.02 * jax.random.normal(nxt(), (d_model,), jnp.float32)
    raw["ln_g"] = 1.0 + 0.1 * jax.random.normal(nxt(), (d_model,), jnp.float32)
    raw["ln_b"] = 0.02 * jax.random.normal(nxt(), (d_model,), jnp.float32)
    x = jax.random.normal(nxt(), (B, L, d_model), jnp.float32)

    params = prepare_params(raw, window_sizes)
    out = bottleneck_construct(x, params, window_sizes)
    out = jax.block_until_ready(out)

    ref = reference(x, raw, window_sizes)
    L_out = L + sum([L // 2, L // 4, L // 8])
    assert out.shape == (B, L_out, d_model), out.shape
    assert ref.shape == out.shape
    # Rows of the raw input only go through f32 LayerNorm -> tight match.
    assert jnp.allclose(out[:, :L, :], ref[:, :L, :], atol=1e-4, rtol=1e-4), \
        float(jnp.max(jnp.abs(out[:, :L, :] - ref[:, :L, :])))
    # Pyramid rows go through bf16-input / f32-accumulate MXU matmuls.
    assert jnp.allclose(out, ref, atol=5e-2, rtol=5e-2), \
        float(jnp.max(jnp.abs(out - ref)))

    print("KERNEL_OK")
</pallas_src>

<mosaic_0001>
module attributes {stable_mosaic.version = 11 : i64} {
  func.func @bottleneck_kernel(%arg0: i32, %arg1: memref<1x32x128xf32, #tpu.memory_space<vmem>>, %arg2: memref<128x128xf32, #tpu.memory_space<vmem>>, %arg3: memref<1x128xf32, #tpu.memory_space<vmem>>, %arg4: memref<256x128xf32, #tpu.memory_space<vmem>>, %arg5: memref<1x128xf32, #tpu.memory_space<vmem>>, %arg6: memref<256x128xf32, #tpu.memory_space<vmem>>, %arg7: memref<1x128xf32, #tpu.memory_space<vmem>>, %arg8: memref<256x128xf32, #tpu.memory_space<vmem>>, %arg9: memref<1x128xf32, #tpu.memory_space<vmem>>, %arg10: memref<128x128xf32, #tpu.memory_space<vmem>>, %arg11: memref<1x128xf32, #tpu.memory_space<vmem>>, %arg12: memref<1x128xf32, #tpu.memory_space<vmem>>, %arg13: memref<1x128xf32, #tpu.memory_space<vmem>>, %arg14: memref<1x60x128xf32, #tpu.memory_space<vmem>>, %arg15: memref<32x128xf32, #tpu.memory_space<vmem>>) attributes {dimension_semantics = [#tpu.dimension_semantics<parallel>], iteration_bounds = array<i64: 2>, scalar_prefetch = 0 : i64, scratch_operands = 1 : i64, tpu.core_type = #tpu.core_type<tc>, window_params = [{transform_indices = @transform_0, window_bounds = array<i64: 1, 32, 128>}, {pipeline_mode = #tpu.pipeline_mode<synchronous>, transform_indices = @transform_1, window_bounds = array<i64: 128, 128>}, {pipeline_mode = #tpu.pipeline_mode<synchronous>, transform_indices = @transform_2, window_bounds = array<i64: 1, 128>}, {pipeline_mode = #tpu.pipeline_mode<synchronous>, transform_indices = @transform_3, window_bounds = array<i64: 256, 128>}, {pipeline_mode = #tpu.pipeline_mode<synchronous>, transform_indices = @transform_4, window_bounds = array<i64: 1, 128>}, {pipeline_mode = #tpu.pipeline_mode<synchronous>, transform_indices = @transform_5, window_bounds = array<i64: 256, 128>}, {pipeline_mode = #tpu.pipeline_mode<synchronous>, transform_indices = @transform_6, window_bounds = array<i64: 1, 128>}, {pipeline_mode = #tpu.pipeline_mode<synchronous>, transform_indices = @transform_7, window_bounds = array<i64: 256, 128>}, {pipeline_mode = #tpu.pipeline_mode<synchronous>, transform_indices = @transform_8, window_bounds = array<i64: 1, 128>}, {pipeline_mode = #tpu.pipeline_mode<synchronous>, transform_indices = @transform_9, window_bounds = array<i64: 128, 128>}, {pipeline_mode = #tpu.pipeline_mode<synchronous>, transform_indices = @transform_10, window_bounds = array<i64: 1, 128>}, {pipeline_mode = #tpu.pipeline_mode<synchronous>, transform_indices = @transform_11, window_bounds = array<i64: 1, 128>}, {pipeline_mode = #tpu.pipeline_mode<synchronous>, transform_indices = @transform_12, window_bounds = array<i64: 1, 128>}, {transform_indices = @transform_13, window_bounds = array<i64: 1, 60, 128>}]} {
    %c0 = arith.constant 0 : index
    %c0_0 = arith.constant 0 : index
    %c0_1 = arith.constant 0 : index
    %0 = vector.load %arg1[%c0, %c0_0, %c0_1] : memref<1x32x128xf32, #tpu.memory_space<vmem>>, vector<1x32x128xf32>
    %1 = vector.shape_cast %0 : vector<1x32x128xf32> to vector<32x128xf32>
    %c0_2 = arith.constant 0 : index
    %c0_3 = arith.constant 0 : index
    %2 = vector.load %arg12[%c0_2, %c0_3] : memref<1x128xf32, #tpu.memory_space<vmem>>, vector<1x128xf32>
    %c0_4 = arith.constant 0 : index
    %c0_5 = arith.constant 0 : index
    %3 = vector.load %arg13[%c0_4, %c0_5] : memref<1x128xf32, #tpu.memory_space<vmem>>, vector<1x128xf32>
    %c0_6 = arith.constant 0 : index
    %c0_7 = arith.constant 0 : index
    %4 = vector.load %arg2[%c0_6, %c0_7] : memref<128x128xf32, #tpu.memory_space<vmem>>, vector<128x128xf32>
    %5 = arith.truncf %1 : vector<32x128xf32> to vector<32x128xbf16>
    %6 = arith.truncf %4 : vector<128x128xf32> to vector<128x128xbf16>
    %cst = arith.constant dense<0.000000e+00> : vector<32x128xf32>
    %7 = tpu.matmul %5, %6, %cst {dimension_numbers = #tpu.dot_dimension_numbers<[1], [0], [0], [1], [0, 0, 1, 1], [], []>} : vector<32x128xbf16>, vector<128x128xbf16>, vector<32x128xf32> -> vector<32x128xf32>
    %c0_8 = arith.constant 0 : index
    %c0_9 = arith.constant 0 : index
    %8 = vector.load %arg3[%c0_8, %c0_9] : memref<1x128xf32, #tpu.memory_space<vmem>>, vector<1x128xf32>
    %9 = vector.broadcast %8 : vector<1x128xf32> to vector<32x128xf32>
    %10 = arith.addf %7, %9 : vector<32x128xf32>
    %c0_10 = arith.constant 0 : index
    %c0_11 = arith.constant 0 : index
    %11 = vector.load %arg15[%c0_10, %c0_11] : memref<32x128xf32, #tpu.memory_space<vmem>>, vector<32x128xf32>
    tpu.vector_store %arg15[%c0_10, %c0_11], %10 {strides = array<i32>} : memref<32x128xf32, #tpu.memory_space<vmem>>, vector<32x128xf32>,
    %c0_12 = arith.constant 0 : index
    %c0_13 = arith.constant 0 : index
    %12 = tpu.strided_load %arg15[%c0_12, %c0_13] {strides = array<i32: 2, 1>} : memref<32x128xf32, #tpu.memory_space<vmem>>, vector<16x128xf32>
    %c1 = arith.constant 1 : index
    %c0_14 = arith.constant 0 : index
    %13 = tpu.strided_load %arg15[%c1, %c0_14] {strides = array<i32: 2, 1>} : memref<32x128xf32, #tpu.memory_space<vmem>>, vector<16x128xf32>
    %14 = tpu.concatenate %12, %13 in 1 : vector<16x128xf32>, vector<16x128xf32> -> vector<16x256xf32>
    %c0_15 = arith.constant 0 : index
    %c0_16 = arith.constant 0 : index
    %15 = vector.load %arg4[%c0_15, %c0_16] : memref<256x128xf32, #tpu.memory_space<vmem>>, vector<256x128xf32>
    %16 = arith.truncf %14 : vector<16x256xf32> to vector<16x256xbf16>
    %17 = arith.truncf %15 : vector<256x128xf32> to vector<256x128xbf16>
    %cst_17 = arith.constant dense<0.000000e+00> : vector<16x128xf32>
    %18 = tpu.matmul %16, %17, %cst_17 {dimension_numbers = #tpu.dot_dimension_numbers<[1], [0], [0], [1], [0, 0, 1, 1], [], []>} : vector<16x256xbf16>, vector<256x128xbf16>, vector<16x128xf32> -> vector<16x128xf32>
    %c0_18 = arith.constant 0 : index
    %c0_19 = arith.constant 0 : index
    %19 = vector.load %arg5[%c0_18, %c0_19] : memref<1x128xf32, #tpu.memory_space<vmem>>, vector<1x128xf32>
    %20 = vector.broadcast %19 : vector<1x128xf32> to vector<16x128xf32>
    %21 = arith.addf %18, %20 : vector<16x128xf32>
    %cst_20 = arith.constant 0.000000e+00 : f32
    %22 = vector.broadcast %cst_20 : f32 to vector<16x128xf32>
    %23 = arith.cmpf ogt, %21, %22 : vector<16x128xf32>
    %24 = math.exp %21 : vector<16x128xf32>
    %cst_21 = arith.constant 1.000000e+00 : f32
    %25 = vector.broadcast %cst_21 : f32 to vector<16x128xf32>
    %26 = arith.subf %24, %25 : vector<16x128xf32>
    %27 = arith.select %23, %21, %26 : vector<16x128xi1>, vector<16x128xf32>
    %c0_22 = arith.constant 0 : index
    %c0_23 = arith.constant 0 : index
    %28 = vector.load %arg15[%c0_22, %c0_23] : memref<32x128xf32, #tpu.memory_space<vmem>>, vector<16x128xf32>
    tpu.vector_store %arg15[%c0_22, %c0_23], %27 {strides = array<i32>} : memref<32x128xf32, #tpu.memory_space<vmem>>, vector<16x128xf32>,
    %c0_24 = arith.constant 0 : index
    %c0_25 = arith.constant 0 : index
    %29 = tpu.strided_load %arg15[%c0_24, %c0_25] {strides = array<i32: 2, 1>} : memref<32x128xf32, #tpu.memory_space<vmem>>, vector<8x128xf32>
    %c1_26 = arith.constant 1 : index
    %c0_27 = arith.constant 0 : index
    %30 = tpu.strided_load %arg15[%c1_26, %c0_27] {strides = array<i32: 2, 1>} : memref<32x128xf32, #tpu.memory_space<vmem>>, vector<8x128xf32>
    %31 = tpu.concatenate %29, %30 in 1 : vector<8x128xf32>, vector<8x128xf32> -> vector<8x256xf32>
    %c0_28 = arith.constant 0 : index
    %c0_29 = arith.constant 0 : index
    %32 = vector.load %arg6[%c0_28, %c0_29] : memref<256x128xf32, #tpu.memory_space<vmem>>, vector<256x128xf32>
    %33 = arith.truncf %31 : vector<8x256xf32> to vector<8x256xbf16>
    %34 = arith.truncf %32 : vector<256x128xf32> to vector<256x128xbf16>
    %cst_30 = arith.constant dense<0.000000e+00> : vector<8x128xf32>
    %35 = tpu.matmul %33, %34, %cst_30 {dimension_numbers = #tpu.dot_dimension_numbers<[1], [0], [0], [1], [0, 0, 1, 1], [], []>} : vector<8x256xbf16>, vector<256x128xbf16>, vector<8x128xf32> -> vector<8x128xf32>
    %c0_31 = arith.constant 0 : index
    %c0_32 = arith.constant 0 : index
    %36 = vector.load %arg7[%c0_31, %c0_32] : memref<1x128xf32, #tpu.memory_space<vmem>>, vector<1x128xf32>
    %37 = vector.broadcast %36 : vector<1x128xf32> to vector<8x128xf32>
    %38 = arith.addf %35, %37 : vector<8x128xf32>
    %cst_33 = arith.constant 0.000000e+00 : f32
    %39 = vector.broadcast %cst_33 : f32 to vector<8x128xf32>
    %40 = arith.cmpf ogt, %38, %39 : vector<8x128xf32>
    %41 = math.exp %38 : vector<8x128xf32>
    %cst_34 = arith.constant 1.000000e+00 : f32
    %42 = vector.broadcast %cst_34 : f32 to vector<8x128xf32>
    %43 = arith.subf %41, %42 : vector<8x128xf32>
    %44 = arith.select %40, %38, %43 : vector<8x128xi1>, vector<8x128xf32>
    %c0_35 = arith.constant 0 : index
    %c0_36 = arith.constant 0 : index
    %45 = vector.load %arg15[%c0_35, %c0_36] : memref<32x128xf32, #tpu.memory_space<vmem>>, vector<8x128xf32>
    tpu.vector_store %arg15[%c0_35, %c0_36], %44 {strides = array<i32>} : memref<32x128xf32, #tpu.memory_space<vmem>>, vector<8x128xf32>,
    %c0_37 = arith.constant 0 : index
    %c0_38 = arith.constant 0 : index
    %46 = tpu.strided_load %arg15[%c0_37, %c0_38] {strides = array<i32: 2, 1>} : memref<32x128xf32, #tpu.memory_space<vmem>>, vector<4x128xf32>
    %c1_39 = arith.constant 1 : index
    %c0_40 = arith.constant 0 : index
    %47 = tpu.strided_load %arg15[%c1_39, %c0_40] {strides = array<i32: 2, 1>} : memref<32x128xf32, #tpu.memory_space<vmem>>, vector<4x128xf32>
    %48 = tpu.concatenate %46, %47 in 1 : vector<4x128xf32>, vector<4x128xf32> -> vector<4x256xf32>
    %c0_41 = arith.constant 0 : index
    %c0_42 = arith.constant 0 : index
    %49 = vector.load %arg8[%c0_41, %c0_42] : memref<256x128xf32, #tpu.memory_space<vmem>>, vector<256x128xf32>
    %50 = arith.truncf %48 : vector<4x256xf32> to vector<4x256xbf16>
    %51 = arith.truncf %49 : vector<256x128xf32> to vector<256x128xbf16>
    %cst_43 = arith.constant dense<0.000000e+00> : vector<4x128xf32>
    %52 = tpu.matmul %50, %51, %cst_43 {dimension_numbers = #tpu.dot_dimension_numbers<[1], [0], [0], [1], [0, 0, 1, 1], [], []>} : vector<4x256xbf16>, vector<256x128xbf16>, vector<4x128xf32> -> vector<4x128xf32>
    %c0_44 = arith.constant 0 : index
    %c0_45 = arith.constant 0 : index
    %53 = vector.load %arg9[%c0_44, %c0_45] : memref<1x128xf32, #tpu.memory_space<vmem>>, vector<1x128xf32>
    %54 = vector.broadcast %53 : vector<1x128xf32> to vector<4x128xf32>
    %55 = arith.addf %52, %54 : vector<4x128xf32>
    %cst_46 = arith.constant 0.000000e+00 : f32
    %56 = vector.broadcast %cst_46 : f32 to vector<4x128xf32>
    %57 = arith.cmpf ogt, %55, %56 : vector<4x128xf32>
    %58 = math.exp %55 : vector<4x128xf32>
    %cst_47 = arith.constant 1.000000e+00 : f32
    %59 = vector.broadcast %cst_47 : f32 to vector<4x128xf32>
    %60 = arith.subf %58, %59 : vector<4x128xf32>
    %61 = arith.select %57, %55, %60 : vector<4x128xi1>, vector<4x128xf32>
    %c0_48 = arith.constant 0 : index
    %c0_49 = arith.constant 0 : index
    %62 = vector.load %arg15[%c0_48, %c0_49] : memref<32x128xf32, #tpu.memory_space<vmem>>, vector<4x128xf32>
    tpu.vector_store %arg15[%c0_48, %c0_49], %61 {strides = array<i32>} : memref<32x128xf32, #tpu.memory_space<vmem>>, vector<4x128xf32>,
    %63 = tpu.concatenate %27, %44, %61 in 0 : vector<16x128xf32>, vector<8x128xf32>, vector<4x128xf32> -> vector<28x128xf32>
    %c0_50 = arith.constant 0 : index
    %c0_51 = arith.constant 0 : index
    %64 = vector.load %arg10[%c0_50, %c0_51] : memref<128x128xf32, #tpu.memory_space<vmem>>, vector<128x128xf32>
    %65 = arith.truncf %63 : vector<28x128xf32> to vector<28x128xbf16>
    %66 = arith.truncf %64 : vector<128x128xf32> to vector<128x128xbf16>
    %cst_52 = arith.constant dense<0.000000e+00> : vector<28x128xf32>
    %67 = tpu.matmul %65, %66, %cst_52 {dimension_numbers = #tpu.dot_dimension_numbers<[1], [0], [0], [1], [0, 0, 1, 1], [], []>} : vector<28x128xbf16>, vector<128x128xbf16>, vector<28x128xf32> -> vector<28x128xf32>
    %c0_53 = arith.constant 0 : index
    %c0_54 = arith.constant 0 : index
    %68 = vector.load %arg11[%c0_53, %c0_54] : memref<1x128xf32, #tpu.memory_space<vmem>>, vector<1x128xf32>
    %69 = vector.broadcast %68 : vector<1x128xf32> to vector<28x128xf32>
    %70 = arith.addf %67, %69 : vector<28x128xf32>
    %cst_55 = arith.constant dense<0.000000e+00> : vector<32xf32>
    %71 = vector.multi_reduction <add>, %1, %cst_55 [1] : vector<32x128xf32> to vector<32xf32>
    %72 = vector.shape_cast %71 : vector<32xf32> to vector<32x1xf32>
    %cst_56 = arith.constant 1.280000e+02 : f32
    %73 = vector.broadcast %cst_56 : f32 to vector<32x1xf32>
    %74 = arith.divf %72, %73 : vector<32x1xf32>
    %75 = vector.broadcast %74 : vector<32x1xf32> to vector<32x128xf32>
    %76 = arith.subf %1, %75 : vector<32x128xf32>
    %77 = arith.mulf %76, %76 : vector<32x128xf32>
    %cst_57 = arith.constant dense<0.000000e+00> : vector<32xf32>
    %78 = vector.multi_reduction <add>, %77, %cst_57 [1] : vector<32x128xf32> to vector<32xf32>
    %79 = vector.shape_cast %78 : vector<32xf32> to vector<32x1xf32>
    %cst_58 = arith.constant 1.280000e+02 : f32
    %80 = vector.broadcast %cst_58 : f32 to vector<32x1xf32>
    %81 = arith.divf %79, %80 : vector<32x1xf32>
    %82 = vector.broadcast %74 : vector<32x1xf32> to vector<32x128xf32>
    %83 = arith.subf %1, %82 : vector<32x128xf32>
    %cst_59 = arith.constant 9.99999974E-6 : f32
    %84 = vector.broadcast %cst_59 : f32 to vector<32x1xf32>
    %85 = arith.addf %81, %84 : vector<32x1xf32>
    %86 = math.rsqrt %85 : vector<32x1xf32>
    %87 = vector.broadcast %86 : vector<32x1xf32> to vector<32x128xf32>
    %88 = arith.mulf %83, %87 : vector<32x128xf32>
    %89 = vector.broadcast %2 : vector<1x128xf32> to vector<32x128xf32>
    %90 = arith.mulf %88, %89 : vector<32x128xf32>
    %91 = vector.broadcast %3 : vector<1x128xf32> to vector<32x128xf32>
    %92 = arith.addf %90, %91 : vector<32x128xf32>
    %c0_60 = arith.constant 0 : index
    %c0_61 = arith.constant 0 : index
    %c0_62 = arith.constant 0 : index
    %93 = vector.load %arg14[%c0_60, %c0_61, %c0_62] : memref<1x60x128xf32, #tpu.memory_space<vmem>>, vector<1x32x128xf32>
    %94 = vector.shape_cast %93 : vector<1x32x128xf32> to vector<32x128xf32>
    %95 = vector.shape_cast %92 : vector<32x128xf32> to vector<1x32x128xf32>
    tpu.vector_store %arg14[%c0_60, %c0_61, %c0_62], %95 {strides = array<i32>} : memref<1x60x128xf32, #tpu.memory_space<vmem>>, vector<1x32x128xf32>,
    %cst_63 = arith.constant dense<0.000000e+00> : vector<28xf32>
    %96 = vector.multi_reduction <add>, %70, %cst_63 [1] : vector<28x128xf32> to vector<28xf32>
    %97 = vector.shape_cast %96 : vector<28xf32> to vector<28x1xf32>
    %cst_64 = arith.constant 1.280000e+02 : f32
    %98 = vector.broadcast %cst_64 : f32 to vector<28x1xf32>
    %99 = arith.divf %97, %98 : vector<28x1xf32>
    %100 = vector.broadcast %99 : vector<28x1xf32> to vector<28x128xf32>
    %101 = arith.subf %70, %100 : vector<28x128xf32>
    %102 = arith.mulf %101, %101 : vector<28x128xf32>
    %cst_65 = arith.constant dense<0.000000e+00> : vector<28xf32>
    %103 = vector.multi_reduction <add>, %102, %cst_65 [1] : vector<28x128xf32> to vector<28xf32>
    %104 = vector.shape_cast %103 : vector<28xf32> to vector<28x1xf32>
    %cst_66 = arith.constant 1.280000e+02 : f32
    %105 = vector.broadcast %cst_66 : f32 to vector<28x1xf32>
    %106 = arith.divf %104, %105 : vector<28x1xf32>
    %107 = vector.broadcast %99 : vector<28x1xf32> to vector<28x128xf32>
    %108 = arith.subf %70, %107 : vector<28x128xf32>
    %cst_67 = arith.constant 9.99999974E-6 : f32
    %109 = vector.broadcast %cst_67 : f32 to vector<28x1xf32>
    %110 = arith.addf %106, %109 : vector<28x1xf32>
    %111 = math.rsqrt %110 : vector<28x1xf32>
    %112 = vector.broadcast %111 : vector<28x1xf32> to vector<28x128xf32>
    %113 = arith.mulf %108, %112 : vector<28x128xf32>
    %114 = vector.broadcast %2 : vector<1x128xf32> to vector<28x128xf32>
    %115 = arith.mulf %113, %114 : vector<28x128xf32>
    %116 = vector.broadcast %3 : vector<1x128xf32> to vector<28x128xf32>
    %117 = arith.addf %115, %116 : vector<28x128xf32>
    %c0_68 = arith.constant 0 : index
    %c32 = arith.constant 32 : index
    %c0_69 = arith.constant 0 : index
    %118 = vector.load %arg14[%c0_68, %c32, %c0_69] : memref<1x60x128xf32, #tpu.memory_space<vmem>>, vector<1x28x128xf32>
    %119 = vector.shape_cast %118 : vector<1x28x128xf32> to vector<28x128xf32>
    %120 = vector.shape_cast %117 : vector<28x128xf32> to vector<1x28x128xf32>
    tpu.vector_store %arg14[%c0_68, %c32, %c0_69], %120 {strides = array<i32>} : memref<1x60x128xf32, #tpu.memory_space<vmem>>, vector<1x28x128xf32>,
    return
  }
  func.func @transform_0(%arg0: i32) -> (i32, i32, i32) {
    %c0_i32 = arith.constant 0 : i32
    %c0_i32_0 = arith.constant 0 : i32
    %c0_i32_1 = arith.constant 0 : i32
    return %arg0, %c0_i32, %c0_i32_0 : i32, i32, i32
  }
  func.func @transform_1(%arg0: i32) -> (i32, i32) {
    %c0_i32 = arith.constant 0 : i32
    %c0_i32_0 = arith.constant 0 : i32
    %c0_i32_1 = arith.constant 0 : i32
    return %c0_i32, %c0_i32_0 : i32, i32
  }
  func.func @transform_2(%arg0: i32) -> (i32, i32) {
    %c0_i32 = arith.constant 0 : i32
    %c0_i32_0 = arith.constant 0 : i32
    %c0_i32_1 = arith.constant 0 : i32
    return %c0_i32, %c0_i32_0 : i32, i32
  }
  func.func @transform_3(%arg0: i32) -> (i32, i32) {
    %c0_i32 = arith.constant 0 : i32
    %c0_i32_0 = arith.constant 0 : i32
    %c0_i32_1 = arith.constant 0 : i32
    return %c0_i32, %c0_i32_0 : i32, i32
  }
  func.func @transform_4(%arg0: i32) -> (i32, i32) {
    %c0_i32 = arith.constant 0 : i32
    %c0_i32_0 = arith.constant 0 : i32
    %c0_i32_1 = arith.constant 0 : i32
    return %c0_i32, %c0_i32_0 : i32, i32
  }
  func.func @transform_5(%arg0: i32) -> (i32, i32) {
    %c0_i32 = arith.constant 0 : i32
    %c0_i32_0 = arith.constant 0 : i32
    %c0_i32_1 = arith.constant 0 : i32
    return %c0_i32, %c0_i32_0 : i32, i32
  }
  func.func @transform_6(%arg0: i32) -> (i32, i32) {
    %c0_i32 = arith.constant 0 : i32
    %c0_i32_0 = arith.constant 0 : i32
    %c0_i32_1 = arith.constant 0 : i32
    return %c0_i32, %c0_i32_0 : i32, i32
  }
  func.func @transform_7(%arg0: i32) -> (i32, i32) {
    %c0_i32 = arith.constant 0 : i32
    %c0_i32_0 = arith.constant 0 : i32
    %c0_i32_1 = arith.constant 0 : i32
    return %c0_i32, %c0_i32_0 : i32, i32
  }
  func.func @transform_8(%arg0: i32) -> (i32, i32) {
    %c0_i32 = arith.constant 0 : i32
    %c0_i32_0 = arith.constant 0 : i32
    %c0_i32_1 = arith.constant 0 : i32
    return %c0_i32, %c0_i32_0 : i32, i32
  }
  func.func @transform_9(%arg0: i32) -> (i32, i32) {
    %c0_i32 = arith.constant 0 : i32
    %c0_i32_0 = arith.constant 0 : i32
    %c0_i32_1 = arith.constant 0 : i32
    return %c0_i32, %c0_i32_0 : i32, i32
  }
  func.func @transform_10(%arg0: i32) -> (i32, i32) {
    %c0_i32 = arith.constant 0 : i32
    %c0_i32_0 = arith.constant 0 : i32
    %c0_i32_1 = arith.constant 0 : i32
    return %c0_i32, %c0_i32_0 : i32, i32
  }
  func.func @transform_11(%arg0: i32) -> (i32, i32) {
    %c0_i32 = arith.constant 0 : i32
    %c0_i32_0 = arith.constant 0 : i32
    %c0_i32_1 = arith.constant 0 : i32
    return %c0_i32, %c0_i32_0 : i32, i32
  }
  func.func @transform_12(%arg0: i32) -> (i32, i32) {
    %c0_i32 = arith.constant 0 : i32
    %c0_i32_0 = arith.constant 0 : i32
    %c0_i32_1 = arith.constant 0 : i32
    return %c0_i32, %c0_i32_0 : i32, i32
  }
  func.func @transform_13(%arg0: i32) -> (i32, i32, i32) {
    %c0_i32 = arith.constant 0 : i32
    %c0_i32_0 = arith.constant 0 : i32
    %c0_i32_1 = arith.constant 0 : i32
    return %arg0, %c0_i32, %c0_i32_0 : i32, i32, i32
  }
}

</mosaic_0001>

<llo_original>
// kernel: tpu_custom_call.1
$region0: #{tpu_custom_call.1}
  #allocation0 [shape = 'u32[]', space=smem, size = 0x4, offset = 0x4, fixed_abs, tag = 'smem constant byte address 0x4 - core index']
  #allocation1 [shape = 'u32[144,128]{1,0:T(1,128)}', space=vmem, size = 0x12000, scoped, tag = 'internal scratch']
  #allocation2 [shape = 'f32[32,128]{1,0:T(8,128)}', space=vmem, size = 0x4000, scoped, tag = 'scratch operand']
  %s0 = inlined_call_operand.hbm [shape: f32[2,32,128], index: 0, kind: input, shape index: {}]
  %s1 = inlined_call_operand.hbm [shape: f32[128,128], index: 1, kind: input, shape index: {}]
  %s2 = inlined_call_operand.hbm [shape: f32[1,128], index: 2, kind: input, shape index: {}]
  %s3 = inlined_call_operand.hbm [shape: f32[256,128], index: 3, kind: input, shape index: {}]
  %s4 = inlined_call_operand.hbm [shape: f32[1,128], index: 4, kind: input, shape index: {}]
  %s5 = inlined_call_operand.hbm [shape: f32[256,128], index: 5, kind: input, shape index: {}]
  %s6 = inlined_call_operand.hbm [shape: f32[1,128], index: 6, kind: input, shape index: {}]
  %s7 = inlined_call_operand.hbm [shape: f32[256,128], index: 7, kind: input, shape index: {}]
  %s8 = inlined_call_operand.hbm [shape: f32[1,128], index: 8, kind: input, shape index: {}]
  %s9 = inlined_call_operand.hbm [shape: f32[128,128], index: 9, kind: input, shape index: {}]
  %s10 = inlined_call_operand.hbm [shape: f32[1,128], index: 10, kind: input, shape index: {}]
  %s11 = inlined_call_operand.hbm [shape: f32[1,128], index: 11, kind: input, shape index: {}]
  %s12 = inlined_call_operand.hbm [shape: f32[1,128], index: 12, kind: input, shape index: {}]
  %s13 = inlined_call_operand.hbm [shape: f32[2,60,128], index: 13, kind: output, shape index: {}]
  %s14 = sld [smem:[#allocation0]]
  $region137: #{tpu_custom_call.1} parent=0
    _
  %s16 = ssub.s32 1, %s14
  %s17 = scalar_select 0, %s16, %s14
  $region1: #{tpu_custom_call.1} parent=0
    #allocation3 [shape = 'u8[32768]{0}', space=vmem, size = 0x8000, scoped, tag = 'input window, operand 0']
    #allocation4 [shape = 's32[2]{0}', space=sflag, size = 0x8, scoped, tag = 'scoped memory for tpu_custom_call.1']
    #allocation5 [shape = 's32[2]{0}', space=sflag, size = 0x8, scoped, tag = 'scoped memory for tpu_custom_call.1']
    #allocation6 [shape = 'u8[65536]{0}', space=vmem, size = 0x10000, scoped, tag = 'input window, operand 1, single buffered']
    #allocation7 [shape = 's32[1]{0}', space=sflag, size = 0x4, scoped, tag = 'scoped memory for tpu_custom_call.1']
    #allocation8 [shape = 'u8[512]{0}', space=vmem, size = 0x400, scoped, tag = 'input window, operand 2, single buffered']
    #allocation9 [shape = 'u8[131072]{0}', space=vmem, size = 0x20000, scoped, tag = 'input window, operand 3, single buffered']
    #allocation10 [shape = 's32[1]{0}', space=sflag, size = 0x4, scoped, tag = 'scoped memory for tpu_custom_call.1']
    #allocation11 [shape = 'u8[512]{0}', space=vmem, size = 0x400, scoped, tag = 'input window, operand 4, single buffered']
    #allocation12 [shape = 'u8[131072]{0}', space=vmem, size = 0x20000, scoped, tag = 'input window, operand 5, single buffered']
    #allocation13 [shape = 's32[1]{0}', space=sflag, size = 0x4, scoped, tag = 'scoped memory for tpu_custom_call.1']
    #allocation14 [shape = 'u8[512]{0}', space=vmem, size = 0x400, scoped, tag = 'input window, operand 6, single buffered']
    #allocation15 [shape = 'u8[131072]{0}', space=vmem, size = 0x20000, scoped, tag = 'input window, operand 7, single buffered']
    #allocation16 [shape = 's32[1]{0}', space=sflag, size = 0x4, scoped, tag = 'scoped memory for tpu_custom_call.1']
    #allocation17 [shape = 'u8[512]{0}', space=vmem, size = 0x400, scoped, tag = 'input window, operand 8, single buffered']
    #allocation18 [shape = 'u8[65536]{0}', space=vmem, size = 0x10000, scoped, tag = 'input window, operand 9, single buffered']
    #allocation19 [shape = 's32[1]{0}', space=sflag, size = 0x4, scoped, tag = 'scoped memory for tpu_custom_call.1']
    #allocation20 [shape = 'u8[512]{0}', space=vmem, size = 0x400, scoped, tag = 'input window, operand 10, single buffered']
    #allocation21 [shape = 'u8[512]{0}', space=vmem, size = 0x400, scoped, tag = 'input window, operand 11, single buffered']
    #allocation22 [shape = 's32[1]{0}', space=sflag, size = 0x4, scoped, tag = 'scoped memory for tpu_custom_call.1']
    #allocation23 [shape = 'u8[512]{0}', space=vmem, size = 0x400, scoped, tag = 'input window, operand 12, single buffered']
    #allocation24 [shape = 'u8[65536]{0}', space=vmem, size = 0x10000, scoped, tag = 'output window, operand 0']
    %18 = vsyncpa [#allocation4], 0
    %s19 = scalar_lea.sflag [#allocation4], 1
    %20 = vsyncpa %s19, 0
    %21 = vsyncpa [#allocation7], 0
    %22 = vsyncpa [#allocation10], 0
    %23 = vsyncpa [#allocation13], 0
    %24 = vsyncpa [#allocation16], 0
    %25 = vsyncpa [#allocation19], 0
    %26 = vsyncpa [#allocation22], 0
    %27 = vsyncpa [#allocation5], 0
    %s28 = scalar_lea.sflag [#allocation5], 1
    %29 = vsyncpa %s28, 0
    loop: start=0, step=1, limit=4
    $region2: #{tpu_custom_call.1} parent=1 // loop_pre_header
      _
    $region3: #{tpu_custom_call.1} parent=1 // loop_header
      %s31 = sphi 0, %s35
      %p32 = scmp.ge.s32.totalorder %s31, 4
      %s41 = sphi 0, %s43
      %s44 = sphi 0, %s41
      %s45 = sphi 0, %s44
      %s61 = sphi 0, %s45
      %s65 = sphi 0, %s65
      %s67 = sphi 0, %s65
      %s68 = sphi 0, %s67
      %s82 = sphi 0, %s68
      %s86 = sphi 0, %s86
      %s88 = sphi 0, %s86
      %s89 = sphi 0, %s88
      %s103 = sphi 0, %s89
      %s107 = sphi 0, %s107
      %s109 = sphi 0, %s107
      %s110 = sphi 0, %s109
      %s124 = sphi 0, %s110
      %s128 = sphi 0, %s128
      %s130 = sphi 0, %s128
      %s131 = sphi 0, %s130
      %s145 = sphi 0, %s131
      %s149 = sphi 0, %s149
      %s151 = sphi 0, %s149
      %s152 = sphi 0, %s151
      %s166 = sphi 0, %s152
      %s170 = sphi 0, %s170
      %s172 = sphi 0, %s170
      %s173 = sphi 0, %s172
      %s187 = sphi 0, %s173
      %s191 = sphi 0, %s191
      %s193 = sphi 0, %s191
      %s194 = sphi 0, %s193
      %s208 = sphi 0, %s194
      %s212 = sphi 0, %s212
      %s214 = sphi 0, %s212
      %s215 = sphi 0, %s214
      %s229 = sphi 0, %s215
      %s233 = sphi 0, %s233
      %s235 = sphi 0, %s233
      %s236 = sphi 0, %s235
      %s250 = sphi 0, %s236
      %s254 = sphi 0, %s254
      %s256 = sphi 0, %s254
      %s257 = sphi 0, %s256
      %s271 = sphi 0, %s257
      %s275 = sphi 0, %s275
      %s277 = sphi 0, %s275
      %s278 = sphi 0, %s277
      %s292 = sphi 0, %s278
      %s296 = sphi 0, %s296
      %s298 = sphi 0, %s296
      %s299 = sphi 0, %s298
      %s313 = sphi 0, %s299
      %s319 = sphi 0, %s321
      %s322 = sphi 0, %s319
      %s323 = sphi 0, %s322
      %s339 = sphi 0, %s323
    $region4: #{tpu_custom_call.1} parent=1 // loop_header_branch
      %34 = sbr.rel (%p32) target = $region8
    $region5: #{tpu_custom_call.1} parent=1 // loop_body
      %s36 = ssub.s32 %s31, 1
      %s37 = ssub.s32 %s31, 2
      %s38 = sadd.s32 %s31, 1
      %s39 = ssub.s32 %s31, %s38
      %p40 = scmp.eq.s32.totalorder %s39, 0
      %s42 = sadd.s32 %s41, 1
      %s43 = scalar_select %p40, %s41, %s42
      %p46 = pneg %p40
      %p47 = scmp.eq.s32.totalorder %s31, 1
      %p48 = por %p46, %p47
      %p49 = scmp.ne.s32.totalorder %s41, %s44
      %p50 = scmp.eq.s32.totalorder %s31, 0
      %p51 = por %p49, %p50
      %p52 = scmp.ne.s32.totalorder %s41, %s44
      %p53 = scmp.eq.s32.totalorder %s36, 1
      %p54 = por %p52, %p53
      %p55 = scmp.ne.s32.totalorder %s44, %s45
      %p56 = scmp.eq.s32.totalorder %s36, 0
      %p57 = por %p55, %p56
      %p58 = scmp.ne.s32.totalorder %s44, %s45
      %p59 = scmp.eq.s32.totalorder %s37, 1
      %p60 = por %p58, %p59
      %p62 = scmp.ne.s32.totalorder %s45, %s61
      %p63 = scmp.eq.s32.totalorder %s37, 0
      %p64 = por %p62, %p63
      %s66 = sadd.s32 %s65, 1
      %p69 = scmp.eq.s32.totalorder %s31, 1
      %p70 = scmp.ne.s32.totalorder %s65, %s67
      %p71 = scmp.eq.s32.totalorder %s31, 0
      %p72 = por %p70, %p71
      %p73 = scmp.ne.s32.totalorder %s65, %s67
      %p74 = scmp.eq.s32.totalorder %s36, 1
      %p75 = por %p73, %p74
      %p76 = scmp.ne.s32.totalorder %s67, %s68
      %p77 = scmp.eq.s32.totalorder %s36, 0
      %p78 = por %p76, %p77
      %p79 = scmp.ne.s32.totalorder %s67, %s68
      %p80 = scmp.eq.s32.totalorder %s37, 1
      %p81 = por %p79, %p80
      %p83 = scmp.ne.s32.totalorder %s68, %s82
      %p84 = scmp.eq.s32.totalorder %s37, 0
      %p85 = por %p83, %p84
      %s87 = sadd.s32 %s86, 1
      %p90 = scmp.eq.s32.totalorder %s31, 1
      %p91 = scmp.ne.s32.totalorder %s86, %s88
      %p92 = scmp.eq.s32.totalorder %s31, 0
      %p93 = por %p91, %p92
      %p94 = scmp.ne.s32.totalorder %s86, %s88
      %p95 = scmp.eq.s32.totalorder %s36, 1
      %p96 = por %p94, %p95
      %p97 = scmp.ne.s32.totalorder %s88, %s89
      %p98 = scmp.eq.s32.totalorder %s36, 0
      %p99 = por %p97, %p98
      %p100 = scmp.ne.s32.totalorder %s88, %s89
      %p101 = scmp.eq.s32.totalorder %s37, 1
      %p102 = por %p100, %p101
      %p104 = scmp.ne.s32.totalorder %s89, %s103
      %p105 = scmp.eq.s32.totalorder %s37, 0
      %p106 = por %p104, %p105
      %s108 = sadd.s32 %s107, 1
      %p111 = scmp.eq.s32.totalorder %s31, 1
      %p112 = scmp.ne.s32.totalorder %s107, %s109
      %p113 = scmp.eq.s32.totalorder %s31, 0
      %p114 = por %p112, %p113
      %p115 = scmp.ne.s32.totalorder %s107, %s109
      %p116 = scmp.eq.s32.totalorder %s36, 1
      %p117 = por %p115, %p116
      %p118 = scmp.ne.s32.totalorder %s109, %s110
      %p119 = scmp.eq.s32.totalorder %s36, 0
      %p120 = por %p118, %p119
      %p121 = scmp.ne.s32.totalorder %s109, %s110
      %p122 = scmp.eq.s32.totalorder %s37, 1
      %p123 = por %p121, %p122
      %p125 = scmp.ne.s32.totalorder %s110, %s124
      %p126 = scmp.eq.s32.totalorder %s37, 0
      %p127 = por %p125, %p126
      %s129 = sadd.s32 %s128, 1
      %p132 = scmp.eq.s32.totalorder %s31, 1
      %p133 = scmp.ne.s32.totalorder %s128, %s130
      %p134 = scmp.eq.s32.totalorder %s31, 0
      %p135 = por %p133, %p134
      %p136 = scmp.ne.s32.totalorder %s128, %s130
      %p137 = scmp.eq.s32.totalorder %s36, 1
      %p138 = por %p136, %p137
      %p139 = scmp.ne.s32.totalorder %s130, %s131
      %p140 = scmp.eq.s32.totalorder %s36, 0
      %p141 = por %p139, %p140
      %p142 = scmp.ne.s32.totalorder %s130, %s131
      %p143 = scmp.eq.s32.totalorder %s37, 1
      %p144 = por %p142, %p143
      %p146 = scmp.ne.s32.totalorder %s131, %s145
      %p147 = scmp.eq.s32.totalorder %s37, 0
      %p148 = por %p146, %p147
      %s150 = sadd.s32 %s149, 1
      %p153 = scmp.eq.s32.totalorder %s31, 1
      %p154 = scmp.ne.s32.totalorder %s149, %s151
      %p155 = scmp.eq.s32.totalorder %s31, 0
      %p156 = por %p154, %p155
      %p157 = scmp.ne.s32.totalorder %s149, %s151
      %p158 = scmp.eq.s32.totalorder %s36, 1
      %p159 = por %p157, %p158
      %p160 = scmp.ne.s32.totalorder %s151, %s152
      %p161 = scmp.eq.s32.totalorder %s36, 0
      %p162 = por %p160, %p161
      %p163 = scmp.ne.s32.totalorder %s151, %s152
      %p164 = scmp.eq.s32.totalorder %s37, 1
      %p165 = por %p163, %p164
      %p167 = scmp.ne.s32.totalorder %s152, %s166
      %p168 = scmp.eq.s32.totalorder %s37, 0
      %p169 = por %p167, %p168
      %s171 = sadd.s32 %s170, 1
      %p174 = scmp.eq.s32.totalorder %s31, 1
      %p175 = scmp.ne.s32.totalorder %s170, %s172
      %p176 = scmp.eq.s32.totalorder %s31, 0
      %p177 = por %p175, %p176
      %p178 = scmp.ne.s32.totalorder %s170, %s172
      %p179 = scmp.eq.s32.totalorder %s36, 1
      %p180 = por %p178, %p179
      %p181 = scmp.ne.s32.totalorder %s172, %s173
      %p182 = scmp.eq.s32.totalorder %s36, 0
      %p183 = por %p181, %p182
      %p184 = scmp.ne.s32.totalorder %s172, %s173
      %p185 = scmp.eq.s32.totalorder %s37, 1
      %p186 = por %p184, %p185
      %p188 = scmp.ne.s32.totalorder %s173, %s187
      %p189 = scmp.eq.s32.totalorder %s37, 0
      %p190 = por %p188, %p189
      %s192 = sadd.s32 %s191, 1
      %p195 = scmp.eq.s32.totalorder %s31, 1
      %p196 = scmp.ne.s32.totalorder %s191, %s193
      %p197 = scmp.eq.s32.totalorder %s31, 0
      %p198 = por %p196, %p197
      %p199 = scmp.ne.s32.totalorder %s191, %s193
      %p200 = scmp.eq.s32.totalorder %s36, 1
      %p201 = por %p199, %p200
      %p202 = scmp.ne.s32.totalorder %s193, %s194
      %p203 = scmp.eq.s32.totalorder %s36, 0
      %p204 = por %p202, %p203
      %p205 = scmp.ne.s32.totalorder %s193, %s194
      %p206 = scmp.eq.s32.totalorder %s37, 1
      %p207 = por %p205, %p206
      %p209 = scmp.ne.s32.totalorder %s194, %s208
      %p210 = scmp.eq.s32.totalorder %s37, 0
      %p211 = por %p209, %p210
      %s213 = sadd.s32 %s212, 1
      %p216 = scmp.eq.s32.totalorder %s31, 1
      %p217 = scmp.ne.s32.totalorder %s212, %s214
      %p218 = scmp.eq.s32.totalorder %s31, 0
      %p219 = por %p217, %p218
      %p220 = scmp.ne.s32.totalorder %s212, %s214
      %p221 = scmp.eq.s32.totalorder %s36, 1
      %p222 = por %p220, %p221
      %p223 = scmp.ne.s32.totalorder %s214, %s215
      %p224 = scmp.eq.s32.totalorder %s36, 0
      %p225 = por %p223, %p224
      %p226 = scmp.ne.s32.totalorder %s214, %s215
      %p227 = scmp.eq.s32.totalorder %s37, 1
      %p228 = por %p226, %p227
      %p230 = scmp.ne.s32.totalorder %s215, %s229
      %p231 = scmp.eq.s32.totalorder %s37, 0
      %p232 = por %p230, %p231
      %s234 = sadd.s32 %s233, 1
      %p237 = scmp.eq.s32.totalorder %s31, 1
      %p238 = scmp.ne.s32.totalorder %s233, %s235
      %p239 = scmp.eq.s32.totalorder %s31, 0
      %p240 = por %p238, %p239
      %p241 = scmp.ne.s32.totalorder %s233, %s235
      %p242 = scmp.eq.s32.totalorder %s36, 1
      %p243 = por %p241, %p242
      %p244 = scmp.ne.s32.totalorder %s235, %s236
      %p245 = scmp.eq.s32.totalorder %s36, 0
      %p246 = por %p244, %p245
      %p247 = scmp.ne.s32.totalorder %s235, %s236
      %p248 = scmp.eq.s32.totalorder %s37, 1
      %p249 = por %p247, %p248
      %p251 = scmp.ne.s32.totalorder %s236, %s250
      %p252 = scmp.eq.s32.totalorder %s37, 0
      %p253 = por %p251, %p252
      %s255 = sadd.s32 %s254, 1
      %p258 = scmp.eq.s32.totalorder %s31, 1
      %p259 = scmp.ne.s32.totalorder %s254, %s256
      %p260 = scmp.eq.s32.totalorder %s31, 0
      %p261 = por %p259, %p260
      %p262 = scmp.ne.s32.totalorder %s254, %s256
      %p263 = scmp.eq.s32.totalorder %s36, 1
      %p264 = por %p262, %p263
      %p265 = scmp.ne.s32.totalorder %s256, %s257
      %p266 = scmp.eq.s32.totalorder %s36, 0
      %p267 = por %p265, %p266
      %p268 = scmp.ne.s32.totalorder %s256, %s257
      %p269 = scmp.eq.s32.totalorder %s37, 1
      %p270 = por %p268, %p269
      %p272 = scmp.ne.s32.totalorder %s257, %s271
      %p273 = scmp.eq.s32.totalorder %s37, 0
      %p274 = por %p272, %p273
      %s276 = sadd.s32 %s275, 1
      %p279 = scmp.eq.s32.totalorder %s31, 1
      %p280 = scmp.ne.s32.totalorder %s275, %s277
      %p281 = scmp.eq.s32.totalorder %s31, 0
      %p282 = por %p280, %p281
      %p283 = scmp.ne.s32.totalorder %s275, %s277
      %p284 = scmp.eq.s32.totalorder %s36, 1
      %p285 = por %p283, %p284
      %p286 = scmp.ne.s32.totalorder %s277, %s278
      %p287 = scmp.eq.s32.totalorder %s36, 0
      %p288 = por %p286, %p287
      %p289 = scmp.ne.s32.totalorder %s277, %s278
      %p290 = scmp.eq.s32.totalorder %s37, 1
      %p291 = por %p289, %p290
      %p293 = scmp.ne.s32.totalorder %s278, %s292
      %p294 = scmp.eq.s32.totalorder %s37, 0
      %p295 = por %p293, %p294
      %s297 = sadd.s32 %s296, 1
      %p300 = scmp.eq.s32.totalorder %s31, 1
      %p301 = scmp.ne.s32.totalorder %s296, %s298
      %p302 = scmp.eq.s32.totalorder %s31, 0
      %p303 = por %p301, %p302
      %p304 = scmp.ne.s32.totalorder %s296, %s298
      %p305 = scmp.eq.s32.totalorder %s36, 1
      %p306 = por %p304, %p305
      %p307 = scmp.ne.s32.totalorder %s298, %s299
      %p308 = scmp.eq.s32.totalorder %s36, 0
      %p309 = por %p307, %p308
      %p310 = scmp.ne.s32.totalorder %s298, %s299
      %p311 = scmp.eq.s32.totalorder %s37, 1
      %p312 = por %p310, %p311
      %p314 = scmp.ne.s32.totalorder %s299, %s313
      %p315 = scmp.eq.s32.totalorder %s37, 0
      %p316 = por %p314, %p315
      %s317 = ssub.s32 %s31, %s38
      %p318 = scmp.eq.s32.totalorder %s317, 0
      %s320 = sadd.s32 %s319, 1
      %s321 = scalar_select %p318, %s319, %s320
      %p324 = pneg %p318
      %p325 = scmp.eq.s32.totalorder %s31, 1
      %p326 = por %p324, %p325
      %p327 = scmp.ne.s32.totalorder %s319, %s322
      %p328 = scmp.eq.s32.totalorder %s31, 0
      %p329 = por %p327, %p328
      %p330 = scmp.ne.s32.totalorder %s319, %s322
      %p331 = scmp.eq.s32.totalorder %s36, 1
      %p332 = por %p330, %p331
      %p333 = scmp.ne.s32.totalorder %s322, %s323
      %p334 = scmp.eq.s32.totalorder %s36, 0
      %p335 = por %p333, %p334
      %p336 = scmp.ne.s32.totalorder %s322, %s323
      %p337 = scmp.eq.s32.totalorder %s37, 1
      %p338 = por %p336, %p337
      %p340 = scmp.ne.s32.totalorder %s323, %s339
      %p341 = scmp.eq.s32.totalorder %s37, 0
      %p342 = por %p340, %p341
      %p343 = scmp.le.s32.totalorder 1, %s31
      %p344 = scmp.lt.s32.totalorder %s31, 3
      %p345 = pnand %p343, %p344
      %p346 = pneg %p345
      // Predicated region
      $region9: #{tpu_custom_call.1} parent=5 // pred_check
        _
      $region10: #{tpu_custom_call.1} parent=5 // pred_check_branch
        %348 = sbr.rel (%p345) target = $region12
      $region11: #{tpu_custom_call.1} parent=5 // pred_region
        %s349 = ssub.s32 %s31, 1
        // Predicated region
        $region13: #{tpu_custom_call.1} parent=11 // pred_check
          %p350 = pneg %p78
        $region14: #{tpu_custom_call.1} parent=11 // pred_check_branch
          %352 = sbr.rel (%p350) target = $region16
        $region15: #{tpu_custom_call.1} parent=11 // pred_region
          %s354 = ssub.s32 2048, 2048
          %355 = vsyncadd [#allocation7], %s354
          %s356 = sshll.u32 [#allocation6], 4
          %s357 = int_to_ptr.vmem [resolvable:$true] %s356
          %362 = dma.hbm_to_vmem [thread:$0]  %s1, 2048, %s357, [#allocation7], 128, 128, 8
        $region16: #{tpu_custom_call.1} parent=11 // pred_fallthru
          _
        // Predicated region
        $region17: #{tpu_custom_call.1} parent=11 // pred_check
          %p363 = pneg %p99
        $region18: #{tpu_custom_call.1} parent=11 // pred_check_branch
          %365 = sbr.rel (%p363) target = $region20
        $region19: #{tpu_custom_call.1} parent=11 // pred_region
          %s367 = ssub.s32 16, 16
          %368 = vsyncadd [#allocation7], %s367
          %s370 = sshll.u32 [#allocation8], 4
          %s371 = int_to_ptr.vmem [resolvable:$true] %s370
          %373 = dma.hbm_to_vmem [thread:$0]  %s2, 16, %s371, [#allocation7]
        $region20: #{tpu_custom_call.1} parent=11 // pred_fallthru
          _
        // Predicated region
        $region21: #{tpu_custom_call.1} parent=11 // pred_check
          %p374 = pneg %p120
        $region22: #{tpu_custom_call.1} parent=11 // pred_check_branch
          %376 = sbr.rel (%p374) target = $region24
        $region23: #{tpu_custom_call.1} parent=11 // pred_region
          %s378 = ssub.s32 4096, 4096
          %379 = vsyncadd [#allocation10], %s378
          %s380 = sshll.u32 [#allocation9], 4
          %s381 = int_to_ptr.vmem [resolvable:$true] %s380
          %386 = dma.hbm_to_vmem [thread:$0]  %s3, 4096, %s381, [#allocation10], 128, 128, 8
        $region24: #{tpu_custom_call.1} parent=11 // pred_fallthru
          _
        // Predicated region
        $region25: #{tpu_custom_call.1} parent=11 // pred_check
          %p387 = pneg %p141
        $region26: #{tpu_custom_call.1} parent=11 // pred_check_branch
          %389 = sbr.rel (%p387) target = $region28
        $region27: #{tpu_custom_call.1} parent=11 // pred_region
          %s391 = ssub.s32 16, 16
          %392 = vsyncadd [#allocation10], %s391
          %s394 = sshll.u32 [#allocation11], 4
          %s395 = int_to_ptr.vmem [resolvable:$true] %s394
          %397 = dma.hbm_to_vmem [thread:$0]  %s4, 16, %s395, [#allocation10]
        $region28: #{tpu_custom_call.1} parent=11 // pred_fallthru
          _
        // Predicated region
        $region29: #{tpu_custom_call.1} parent=11 // pred_check
          %p398 = pneg %p162
        $region30: #{tpu_custom_call.1} parent=11 // pred_check_branch
          %400 = sbr.rel (%p398) target = $region32
        $region31: #{tpu_custom_call.1} parent=11 // pred_region
          %s402 = ssub.s32 4096, 4096
          %403 = vsyncadd [#allocation13], %s402
          %s404 = sshll.u32 [#allocation12], 4
          %s405 = int_to_ptr.vmem [resolvable:$true] %s404
          %410 = dma.hbm_to_vmem [thread:$0]  %s5, 4096, %s405, [#allocation13], 128, 128, 8
        $region32: #{tpu_custom_call.1} parent=11 // pred_fallthru
          _
        // Predicated region
        $region33: #{tpu_custom_call.1} parent=11 // pred_check
          %p411 = pneg %p183
        $region34: #{tpu_custom_call.1} parent=11 // pred_check_branch
          %413 = sbr.rel (%p411) target = $region36
        $region35: #{tpu_custom_call.1} parent=11 // pred_region
          %s415 = ssub.s32 16, 16
          %416 = vsyncadd [#allocation13], %s415
          %s418 = sshll.u32 [#allocation14], 4
          %s419 = int_to_ptr.vmem [resolvable:$true] %s418
          %421 = dma.hbm_to_vmem [thread:$0]  %s6, 16, %s419, [#allocation13]
        $region36: #{tpu_custom_call.1} parent=11 // pred_fallthru
          _
        // Predicated region
        $region37: #{tpu_custom_call.1} parent=11 // pred_check
          %p422 = pneg %p204
        $region38: #{tpu_custom_call.1} parent=11 // pred_check_branch
          %424 = sbr.rel (%p422) target = $region40
        $region39: #{tpu_custom_call.1} parent=11 // pred_region
          %s426 = ssub.s32 4096, 4096
          %427 = vsyncadd [#allocation16], %s426
          %s428 = sshll.u32 [#allocation15], 4
          %s429 = int_to_ptr.vmem [resolvable:$true] %s428
          %434 = dma.hbm_to_vmem [thread:$0]  %s7, 4096, %s429, [#allocation16], 128, 128, 8
        $region40: #{tpu_custom_call.1} parent=11 // pred_fallthru
          _
        // Predicated region
        $region41: #{tpu_custom_call.1} parent=11 // pred_check
          %p435 = pneg %p225
        $region42: #{tpu_custom_call.1} parent=11 // pred_check_branch
          %437 = sbr.rel (%p435) target = $region44
        $region43: #{tpu_custom_call.1} parent=11 // pred_region
          %s439 = ssub.s32 16, 16
          %440 = vsyncadd [#allocation16], %s439
          %s442 = sshll.u32 [#allocation17], 4
          %s443 = int_to_ptr.vmem [resolvable:$true] %s442
          %445 = dma.hbm_to_vmem [thread:$0]  %s8, 16, %s443, [#allocation16]
        $region44: #{tpu_custom_call.1} parent=11 // pred_fallthru
          _
        // Predicated region
        $region45: #{tpu_custom_call.1} parent=11 // pred_check
          %p446 = pneg %p246
        $region46: #{tpu_custom_call.1} parent=11 // pred_check_branch
          %448 = sbr.rel (%p446) target = $region48
        $region47: #{tpu_custom_call.1} parent=11 // pred_region
          %s450 = ssub.s32 2048, 2048
          %451 = vsyncadd [#allocation19], %s450
          %s452 = sshll.u32 [#allocation18], 4
          %s453 = int_to_ptr.vmem [resolvable:$true] %s452
          %458 = dma.hbm_to_vmem [thread:$0]  %s9, 2048, %s453, [#allocation19], 128, 128, 8
        $region48: #{tpu_custom_call.1} parent=11 // pred_fallthru
          _
        // Predicated region
        $region49: #{tpu_custom_call.1} parent=11 // pred_check
          %p459 = pneg %p267
        $region50: #{tpu_custom_call.1} parent=11 // pred_check_branch
          %461 = sbr.rel (%p459) target = $region52
        $region51: #{tpu_custom_call.1} parent=11 // pred_region
          %s463 = ssub.s32 16, 16
          %464 = vsyncadd [#allocation19], %s463
          %s466 = sshll.u32 [#allocation20], 4
          %s467 = int_to_ptr.vmem [resolvable:$true] %s466
          %469 = dma.hbm_to_vmem [thread:$0]  %s10, 16, %s467, [#allocation19]
        $region52: #{tpu_custom_call.1} parent=11 // pred_fallthru
          _
        // Predicated region
        $region53: #{tpu_custom_call.1} parent=11 // pred_check
          %p470 = pneg %p288
        $region54: #{tpu_custom_call.1} parent=11 // pred_check_branch
          %472 = sbr.rel (%p470) target = $region56
        $region55: #{tpu_custom_call.1} parent=11 // pred_region
          %s474 = ssub.s32 16, 16
          %475 = vsyncadd [#allocation22], %s474
          %s477 = sshll.u32 [#allocation21], 4
          %s478 = int_to_ptr.vmem [resolvable:$true] %s477
          %480 = dma.hbm_to_vmem [thread:$0]  %s11, 16, %s478, [#allocation22]
        $region56: #{tpu_custom_call.1} parent=11 // pred_fallthru
          _
        // Predicated region
        $region57: #{tpu_custom_call.1} parent=11 // pred_check
          %p481 = pneg %p309
        $region58: #{tpu_custom_call.1} parent=11 // pred_check_branch
          %483 = sbr.rel (%p481) target = $region60
        $region59: #{tpu_custom_call.1} parent=11 // pred_region
          %s485 = ssub.s32 16, 16
          %486 = vsyncadd [#allocation22], %s485
          %s488 = sshll.u32 [#allocation23], 4
          %s489 = int_to_ptr.vmem [resolvable:$true] %s488
          %491 = dma.hbm_to_vmem [thread:$0]  %s12, 16, %s489, [#allocation22]
        $region60: #{tpu_custom_call.1} parent=11 // pred_fallthru
          _
      $region12: #{tpu_custom_call.1} parent=5 // pred_fallthru
        _
      %p492 = scmp.lt.s32.totalorder %s31, 2
      // Predicated region
      $region61: #{tpu_custom_call.1} parent=5 // pred_check
        %p493 = pneg %p492
      $region62: #{tpu_custom_call.1} parent=5 // pred_check_branch
        %495 = sbr.rel (%p493) target = $region64
      $region63: #{tpu_custom_call.1} parent=5 // pred_region
        // Predicated region
        $region65: #{tpu_custom_call.1} parent=63 // pred_check
          %p496 = pneg %p51
        $region66: #{tpu_custom_call.1} parent=63 // pred_check_branch
          %498 = sbr.rel (%p496) target = $region68
        $region67: #{tpu_custom_call.1} parent=63 // pred_region
          %s499 = sand.u32 %s41, 1
          %s500 = scalar_lea.sflag [#allocation4], %s499
          %s501 = sand.u32 %s41, 1
          %s502 = smul.addr %s501, 32
          %s503 = scalar_lea.vmem [#allocation3], %s502
          %s505 = ssub.s32 512, 512
          %506 = vsyncadd %s500, %s505
          %s507 = smul.addr %s31, 4
          %s508 = smul.addr %s507, 128
          %s509 = scalar_lea.hbm %s0, %s508
          %s510 = sshll.u32 %s503, 4
          %s511 = int_to_ptr.vmem [resolvable:$true] %s510
          %516 = dma.hbm_to_vmem [thread:$0]  %s509, 512, %s511, %s500, 128, 128, 8
        $region68: #{tpu_custom_call.1} parent=63 // pred_fallthru
          _
      $region64: #{tpu_custom_call.1} parent=5 // pred_fallthru
        _
      %p517 = scmp.le.s32.totalorder 1, %s31
      %p518 = scmp.lt.s32.totalorder %s31, 3
      %p519 = pnand %p517, %p518
      %p520 = pneg %p519
      // Predicated region
      $region69: #{tpu_custom_call.1} parent=5 // pred_check
        _
      $region70: #{tpu_custom_call.1} parent=5 // pred_check_branch
        %522 = sbr.rel (%p519) target = $region72
      $region71: #{tpu_custom_call.1} parent=5 // pred_region
        %s523 = ssub.s32 %s31, 1
        %s524 = sand.u32 %s44, 1
        %s525 = scalar_lea.sflag [#allocation4], %s524
        %s526 = sand.u32 %s44, 1
        %s527 = smul.addr %s526, 32
        %s528 = scalar_lea.vmem [#allocation3], %s527
        // Predicated region
        $region73: #{tpu_custom_call.1} parent=71 // pred_check
          %p529 = pneg %p57
        $region74: #{tpu_custom_call.1} parent=71 // pred_check_branch
          %531 = sbr.rel (%p529) target = $region76
        $region75: #{tpu_custom_call.1} parent=71 // pred_region
          %532 = dma.done %s525, 512
        $region76: #{tpu_custom_call.1} parent=71 // pred_fallthru
          _
        // Predicated region
        $region77: #{tpu_custom_call.1} parent=71 // pred_check
          %p533 = pneg %p78
        $region78: #{tpu_custom_call.1} parent=71 // pred_check_branch
          %535 = sbr.rel (%p533) target = $region80
        $region79: #{tpu_custom_call.1} parent=71 // pred_region
          %536 = dma.done [#allocation7], 2048
        $region80: #{tpu_custom_call.1} parent=71 // pred_fallthru
          _
        // Predicated region
        $region81: #{tpu_custom_call.1} parent=71 // pred_check
          %p537 = pneg %p99
        $region82: #{tpu_custom_call.1} parent=71 // pred_check_branch
          %539 = sbr.rel (%p537) target = $region84
        $region83: #{tpu_custom_call.1} parent=71 // pred_region
          %540 = dma.done [#allocation7], 16
        $region84: #{tpu_custom_call.1} parent=71 // pred_fallthru
          _
        // Predicated region
        $region85: #{tpu_custom_call.1} parent=71 // pred_check
          %p541 = pneg %p120
        $region86: #{tpu_custom_call.1} parent=71 // pred_check_branch
          %543 = sbr.rel (%p541) target = $region88
        $region87: #{tpu_custom_call.1} parent=71 // pred_region
          %544 = dma.done [#allocation10], 4096
        $region88: #{tpu_custom_call.1} parent=71 // pred_fallthru
          _
        // Predicated region
        $region89: #{tpu_custom_call.1} parent=71 // pred_check
          %p545 = pneg %p141
        $region90: #{tpu_custom_call.1} parent=71 // pred_check_branch
          %547 = sbr.rel (%p545) target = $region92
        $region91: #{tpu_custom_call.1} parent=71 // pred_region
          %548 = dma.done [#allocation10], 16
        $region92: #{tpu_custom_call.1} parent=71 // pred_fallthru
          _
        // Predicated region
        $region93: #{tpu_custom_call.1} parent=71 // pred_check
          %p549 = pneg %p162
        $region94: #{tpu_custom_call.1} parent=71 // pred_check_branch
          %551 = sbr.rel (%p549) target = $region96
        $region95: #{tpu_custom_call.1} parent=71 // pred_region
          %552 = dma.done [#allocation13], 4096
        $region96: #{tpu_custom_call.1} parent=71 // pred_fallthru
          _
        // Predicated region
        $region97: #{tpu_custom_call.1} parent=71 // pred_check
          %p553 = pneg %p183
        $region98: #{tpu_custom_call.1} parent=71 // pred_check_branch
          %555 = sbr.rel (%p553) target = $region100
        $region99: #{tpu_custom_call.1} parent=71 // pred_region
          %556 = dma.done [#allocation13], 16
        $region100: #{tpu_custom_call.1} parent=71 // pred_fallthru
          _
        // Predicated region
        $region101: #{tpu_custom_call.1} parent=71 // pred_check
          %p557 = pneg %p204
        $region102: #{tpu_custom_call.1} parent=71 // pred_check_branch
          %559 = sbr.rel (%p557) target = $region104
        $region103: #{tpu_custom_call.1} parent=71 // pred_region
          %560 = dma.done [#allocation16], 4096
        $region104: #{tpu_custom_call.1} parent=71 // pred_fallthru
          _
        // Predicated region
        $region105: #{tpu_custom_call.1} parent=71 // pred_check
          %p561 = pneg %p225
        $region106: #{tpu_custom_call.1} parent=71 // pred_check_branch
          %563 = sbr.rel (%p561) target = $region108
        $region107: #{tpu_custom_call.1} parent=71 // pred_region
          %564 = dma.done [#allocation16], 16
        $region108: #{tpu_custom_call.1} parent=71 // pred_fallthru
          _
        // Predicated region
        $region109: #{tpu_custom_call.1} parent=71 // pred_check
          %p565 = pneg %p246
        $region110: #{tpu_custom_call.1} parent=71 // pred_check_branch
          %567 = sbr.rel (%p565) target = $region112
        $region111: #{tpu_custom_call.1} parent=71 // pred_region
          %568 = dma.done [#allocation19], 2048
        $region112: #{tpu_custom_call.1} parent=71 // pred_fallthru
          _
        // Predicated region
        $region113: #{tpu_custom_call.1} parent=71 // pred_check
          %p569 = pneg %p267
        $region114: #{tpu_custom_call.1} parent=71 // pred_check_branch
          %571 = sbr.rel (%p569) target = $region116
        $region115: #{tpu_custom_call.1} parent=71 // pred_region
          %572 = dma.done [#allocation19], 16
        $region116: #{tpu_custom_call.1} parent=71 // pred_fallthru
          _
        // Predicated region
        $region117: #{tpu_custom_call.1} parent=71 // pred_check
          %p573 = pneg %p288
        $region118: #{tpu_custom_call.1} parent=71 // pred_check_branch
          %575 = sbr.rel (%p573) target = $region120
        $region119: #{tpu_custom_call.1} parent=71 // pred_region
          %576 = dma.done [#allocation22], 16
        $region120: #{tpu_custom_call.1} parent=71 // pred_fallthru
          _
        // Predicated region
        $region121: #{tpu_custom_call.1} parent=71 // pred_check
          %p577 = pneg %p309
        $region122: #{tpu_custom_call.1} parent=71 // pred_check_branch
          %579 = sbr.rel (%p577) target = $region124
        $region123: #{tpu_custom_call.1} parent=71 // pred_region
          %580 = dma.done [#allocation22], 16
        $region124: #{tpu_custom_call.1} parent=71 // pred_fallthru
          _
        %s581 = sand.u32 %s44, 1
        %s582 = scalar_lea.sflag [#allocation4], %s581
        %s583 = sand.u32 %s44, 1
        %s584 = smul.addr %s583, 32
        %s585 = scalar_lea.vmem [#allocation3], %s584
        %p586 = pneg %p57
        %p587 = pneg %p54
        %p588 = pneg %p78
        %p589 = pneg %p75
        %p590 = pneg %p99
        %p591 = pneg %p96
        %p592 = pneg %p120
        %p593 = pneg %p117
        %p594 = pneg %p141
        %p595 = pneg %p138
        %p596 = pneg %p162
        %p597 = pneg %p159
        %p598 = pneg %p183
        %p599 = pneg %p180
        %p600 = pneg %p204
        %p601 = pneg %p201
        %p602 = pneg %p225
        %p603 = pneg %p222
        %p604 = pneg %p246
        %p605 = pneg %p243
        %p606 = pneg %p267
        %p607 = pneg %p264
        %p608 = pneg %p288
        %p609 = pneg %p285
        %p610 = pneg %p309
        %p611 = pneg %p306
        %p612 = pneg %p335
        %p613 = pneg %p332
        %s614 = sand.u32 %s322, 1
        %s615 = scalar_lea.sflag [#allocation5], %s614
        %s616 = sand.u32 %s322, 1
        %s617 = smul.addr %s616, 64
        %s618 = scalar_lea.vmem [#allocation24], %s617
        %v620 = vld [vmem:[%s528] sm:$0xff]
        %v621 = vld [vmem:[%s528 + $0x8] sm:$0xff]
        %v622 = vld [vmem:[%s528 + $0x10] sm:$0xff]
        %v623 = vld [vmem:[%s528 + $0x18] sm:$0xff]
        %v624 = vld [vmem:[#allocation21] sm:$0x1]
        %v625 = vld [vmem:[#allocation23] sm:$0x1]
        %v626 = vld [vmem:[#allocation6] sm:$0xff]
        %v627 = vld [vmem:[#allocation6 + $0x8] sm:$0xff]
        %v628 = vld [vmem:[#allocation6 + $0x10] sm:$0xff]
        %v629 = vld [vmem:[#allocation6 + $0x18] sm:$0xff]
        %v630 = vld [vmem:[#allocation6 + $0x20] sm:$0xff]
        %v631 = vld [vmem:[#allocation6 + $0x28] sm:$0xff]
        %v632 = vld [vmem:[#allocation6 + $0x30] sm:$0xff]
        %v633 = vld [vmem:[#allocation6 + $0x38] sm:$0xff]
        %v634 = vld [vmem:[#allocation6 + $0x40] sm:$0xff]
        %v635 = vld [vmem:[#allocation6 + $0x48] sm:$0xff]
        %v636 = vld [vmem:[#allocation6 + $0x50] sm:$0xff]
        %v637 = vld [vmem:[#allocation6 + $0x58] sm:$0xff]
        %v638 = vld [vmem:[#allocation6 + $0x60] sm:$0xff]
        %v639 = vld [vmem:[#allocation6 + $0x68] sm:$0xff]
        %v640 = vld [vmem:[#allocation6 + $0x70] sm:$0xff]
        %v641 = vld [vmem:[#allocation6 + $0x78] sm:$0xff]
        %v642 = vpack.c.bf16 %v621, %v620
        %v643 = vpack.c.bf16 %v623, %v622
        %v644 = vpack.c.bf16 %v627, %v626
        %v645 = vpack.c.bf16 %v629, %v628
        %v646 = vpack.c.bf16 %v631, %v630
        %v647 = vpack.c.bf16 %v633, %v632
        %v648 = vpack.c.bf16 %v635, %v634
        %v649 = vpack.c.bf16 %v637, %v636
        %v650 = vpack.c.bf16 %v639, %v638
        %v651 = vpack.c.bf16 %v641, %v640
        %v652 = vld [vmem:[#allocation8] sm:$0x1]
        %v654 = vlaneseq
        %v655 = vshrl.u32 %v654, 7
        %v656 = vsub.s32 0, %v655
        %v657 = vrot.slane %v652, %v656
        %659 = vmatprep.subr.bf16.mxu0 0
        %660 = vmatpush1.bf16.msra.mxu0 %v644
        %661 = vmatprep.subr.bf16.mxu0 0
        %662 = vmatpush1.bf16.msra.mxu0 %v645
        %663 = vmatprep.subr.bf16.mxu0 0
        %664 = vmatpush1.bf16.msra.mxu0 %v646
        %665 = vmatprep.subr.bf16.mxu0 0
        %666 = vmatpush1.bf16.msra.mxu0 %v647
        %667 = vmatprep.subr.bf16.mxu0 0
        %668 = vmatpush1.bf16.msra.mxu0 %v648
        %669 = vmatprep.subr.bf16.mxu0 0
        %670 = vmatpush1.bf16.msra.mxu0 %v649
        %671 = vmatprep.subr.bf16.mxu0 0
        %672 = vmatpush1.bf16.msra.mxu0 %v650
        %673 = vmatprep.subr.bf16.mxu0 0
        %674 = vmatpush1.bf16.msra.mxu0 %v651
        %675 = vmatprep.subr.bf16.mxu0 0
        %676 = vmatpush1.bf16.msra.mxu0 0
        %677 = vmatprep.subr.bf16.mxu0 0
        %678 = vmatpush1.bf16.msra.mxu0 0
        %679 = vmatprep.subr.bf16.mxu0 0
        %680 = vmatpush1.bf16.msra.mxu0 0
        %681 = vmatprep.subr.bf16.mxu0 0
        %682 = vmatpush1.bf16.msra.mxu0 0
        %683 = vmatprep.subr.bf16.mxu0 0
        %684 = vmatpush1.bf16.msra.mxu0 0
        %685 = vmatprep.subr.bf16.mxu0 0
        %686 = vmatpush1.bf16.msra.mxu0 0
        %687 = vmatprep.subr.bf16.mxu0 0
        %688 = vmatpush1.bf16.msra.mxu0 0
        %689 = vmatprep.subr.bf16.mxu0 0
        %690 = vmatpush1.bf16.msra.mxu0 0
        %691 = vmatprep.mubr.bf16.mxu0 0
        %692 = vmatmul.mubr.bf16.gmra.mrb[0].mxu0 %v642
        %v693 = vpop.f32.mrb[0].mxu0
        %v694 = vadd.f32 %v657, %v693
        %v695 = vpop.f32.mrb[0].mxu0
        %v696 = vpop.f32.mrb[0].mxu0
        %v697 = vadd.f32 %v657, %v696
        %v698 = vpop.f32.mrb[0].mxu0
        %699 = vmatprep.mubr.bf16.mxu0 0
        %700 = vmatmul.mubr.bf16.gmra.mrb[0].mxu0 %v643
        %v701 = vpop.f32.mrb[0].mxu0
        %v702 = vadd.f32 %v657, %v701
        %v703 = vpop.f32.mrb[0].mxu0
        %v704 = vpop.f32.mrb[0].mxu0
        %v705 = vadd.f32 %v657, %v704
        %v706 = vpop.f32.mrb[0].mxu0
        %707 = vdwg.mxu0
        %708 = vst [vmem:[#allocation2] sm:$0xff] %v694
        %709 = vst [vmem:[#allocation2 + $0x8] sm:$0xff] %v697
        %710 = vst [vmem:[#allocation2 + $0x10] sm:$0xff] %v702
        %711 = vst [vmem:[#allocation2 + $0x18] sm:$0xff] %v705
        %v712 = vld [vmem:[#allocation2] ss:$2 sm:$0xff]
        %s713 = scalar_lea.vmem [#allocation2], 16
        %v714 = vld [vmem:[%s713] ss:$2 sm:$0xff]
        %s715 = scalar_lea.vmem [#allocation2], 1
        %v716 = vld [vmem:[%s715] ss:$2 sm:$0xff]
        %s717 = scalar_lea.vmem [#allocation2], 17
        %v718 = vld [vmem:[%s717] ss:$2 sm:$0xff]
        %v719 = vld [vmem:[#allocation9] sm:$0xff]
        %v720 = vld [vmem:[#allocation9 + $0x8] sm:$0xff]
        %v721 = vld [vmem:[#allocation9 + $0x10] sm:$0xff]
        %v722 = vld [vmem:[#allocation9 + $0x18] sm:$0xff]
        %v723 = vld [vmem:[#allocation9 + $0x20] sm:$0xff]
        %v724 = vld [vmem:[#allocation9 + $0x28] sm:$0xff]
        %v725 = vld [vmem:[#allocation9 + $0x30] sm:$0xff]
        %v726 = vld [vmem:[#allocation9 + $0x38] sm:$0xff]
        %v727 = vld [vmem:[#allocation9 + $0x40] sm:$0xff]
        %v728 = vld [vmem:[#allocation9 + $0x48] sm:$0xff]
        %v729 = vld [vmem:[#allocation9 + $0x50] sm:$0xff]
        %v730 = vld [vmem:[#allocation9 + $0x58] sm:$0xff]
        %v731 = vld [vmem:[#allocation9 + $0x60] sm:$0xff]
        %v732 = vld [vmem:[#allocation9 + $0x68] sm:$0xff]
        %v733 = vld [vmem:[#allocation9 + $0x70] sm:$0xff]
        %v734 = vld [vmem:[#allocation9 + $0x78] sm:$0xff]
        %v735 = vld [vmem:[#allocation9 + $0x80] sm:$0xff]
        %v736 = vld [vmem:[#allocation9 + $0x88] sm:$0xff]
        %v737 = vld [vmem:[#allocation9 + $0x90] sm:$0xff]
        %v738 = vld [vmem:[#allocation9 + $0x98] sm:$0xff]
        %v739 = vld [vmem:[#allocation9 + $0xa0] sm:$0xff]
        %v740 = vld [vmem:[#allocation9 + $0xa8] sm:$0xff]
        %v741 = vld [vmem:[#allocation9 + $0xb0] sm:$0xff]
        %v742 = vld [vmem:[#allocation9 + $0xb8] sm:$0xff]
        %v743 = vld [vmem:[#allocation9 + $0xc0] sm:$0xff]
        %v744 = vld [vmem:[#allocation9 + $0xc8] sm:$0xff]
        %v745 = vld [vmem:[#allocation9 + $0xd0] sm:$0xff]
        %v746 = vld [vmem:[#allocation9 + $0xd8] sm:$0xff]
        %v747 = vld [vmem:[#allocation9 + $0xe0] sm:$0xff]
        %v748 = vld [vmem:[#allocation9 + $0xe8] sm:$0xff]
        %v749 = vld [vmem:[#allocation9 + $0xf0] sm:$0xff]
        %v750 = vld [vmem:[#allocation9 + $0xf8] sm:$0xff]
        %v751 = vpack.c.bf16 %v714, %v712
        %v752 = vpack.c.bf16 %v718, %v716
        %v753 = vpack.c.bf16 %v720, %v719
        %v754 = vpack.c.bf16 %v722, %v721
        %v755 = vpack.c.bf16 %v724, %v723
        %v756 = vpack.c.bf16 %v726, %v725
        %v757 = vpack.c.bf16 %v728, %v727
        %v758 = vpack.c.bf16 %v730, %v729
        %v759 = vpack.c.bf16 %v732, %v731
        %v760 = vpack.c.bf16 %v734, %v733
        %v761 = vpack.c.bf16 %v736, %v735
        %v762 = vpack.c.bf16 %v738, %v737
        %v763 = vpack.c.bf16 %v740, %v739
        %v764 = vpack.c.bf16 %v742, %v741
        %v765 = vpack.c.bf16 %v744, %v743
        %v766 = vpack.c.bf16 %v746, %v745
        %v767 = vpack.c.bf16 %v748, %v747
        %v768 = vpack.c.bf16 %v750, %v749
        %v769 = vld [vmem:[#allocation11] sm:$0x1]
        %v771 = vlaneseq
        %v772 = vshrl.u32 %v771, 7
        %v773 = vsub.s32 0, %v772
        %v774 = vrot.slane %v769, %v773
        %776 = vmatprep.subr.bf16.mxu0 0
        %777 = vmatpush1.bf16.msra.mxu0 %v753
        %778 = vmatprep.subr.bf16.mxu0 0
        %779 = vmatpush1.bf16.msra.mxu0 %v754
        %780 = vmatprep.subr.bf16.mxu0 0
        %781 = vmatpush1.bf16.msra.mxu0 %v755
        %782 = vmatprep.subr.bf16.mxu0 0
        %783 = vmatpush1.bf16.msra.mxu0 %v756
        %784 = vmatprep.subr.bf16.mxu0 0
        %785 = vmatpush1.bf16.msra.mxu0 %v757
        %786 = vmatprep.subr.bf16.mxu0 0
        %787 = vmatpush1.bf16.msra.mxu0 %v758
        %788 = vmatprep.subr.bf16.mxu0 0
        %789 = vmatpush1.bf16.msra.mxu0 %v759
        %790 = vmatprep.subr.bf16.mxu0 0
        %791 = vmatpush1.bf16.msra.mxu0 %v760
        %792 = vmatprep.subr.bf16.mxu0 0
        %793 = vmatpush1.bf16.msra.mxu0 %v761
        %794 = vmatprep.subr.bf16.mxu0 0
        %795 = vmatpush1.bf16.msra.mxu0 %v762
        %796 = vmatprep.subr.bf16.mxu0 0
        %797 = vmatpush1.bf16.msra.mxu0 %v763
        %798 = vmatprep.subr.bf16.mxu0 0
        %799 = vmatpush1.bf16.msra.mxu0 %v764
        %800 = vmatprep.subr.bf16.mxu0 0
        %801 = vmatpush1.bf16.msra.mxu0 %v765
        %802 = vmatprep.subr.bf16.mxu0 0
        %803 = vmatpush1.bf16.msra.mxu0 %v766
        %804 = vmatprep.subr.bf16.mxu0 0
        %805 = vmatpush1.bf16.msra.mxu0 %v767
        %806 = vmatprep.subr.bf16.mxu0 0
        %807 = vmatpush1.bf16.msra.mxu0 %v768
        %808 = vmatprep.mubr.bf16.mxu0 %v752
        %809 = vmatmul.mubr.bf16.gmra.mrb[0].mxu0 %v751
        %v810 = vpop.f32.mrb[0].mxu0
        %v811 = vadd.f32 %v774, %v810
        %v812 = vpop.f32.mrb[0].mxu0
        %v813 = vpop.f32.mrb[0].mxu0
        %v814 = vadd.f32 %v774, %v813
        %v815 = vpop.f32.mrb[0].mxu0
        %816 = vdwg.mxu0
        %vm817 = vcmp.gt.f32.partialorder %v811, 0.0
        %vm818 = vcmp.gt.f32.partialorder %v814, 0.0
        %v819 = vmul.f32 %v811, 1.442695
        %v820 = vpow.pop %v819
        %v821 = vmul.f32 %v814, 1.442695
        %v822 = vpow.pop %v821
        %v823 = vsub.f32 %v820, 1.0
        %v824 = vsub.f32 %v822, 1.0
        %v825 = vsel %vm817, %v811, %v823
        %v826 = vsel %vm818, %v814, %v824
        %827 = vst [vmem:[#allocation2] sm:$0xff] %v825
        %828 = vst [vmem:[#allocation2 + $0x8] sm:$0xff] %v826
        %v829 = vld [vmem:[#allocation2] ss:$2 sm:$0xff]
        %v830 = vld [vmem:[%s715] ss:$2 sm:$0xff]
        %v831 = vld [vmem:[#allocation12] sm:$0xff]
        %v832 = vld [vmem:[#allocation12 + $0x8] sm:$0xff]
        %v833 = vld [vmem:[#allocation12 + $0x10] sm:$0xff]
        %v834 = vld [vmem:[#allocation12 + $0x18] sm:$0xff]
        %v835 = vld [vmem:[#allocation12 + $0x20] sm:$0xff]
        %v836 = vld [vmem:[#allocation12 + $0x28] sm:$0xff]
        %v837 = vld [vmem:[#allocation12 + $0x30] sm:$0xff]
        %v838 = vld [vmem:[#allocation12 + $0x38] sm:$0xff]
        %v839 = vld [vmem:[#allocation12 + $0x40] sm:$0xff]
        %v840 = vld [vmem:[#allocation12 + $0x48] sm:$0xff]
        %v841 = vld [vmem:[#allocation12 + $0x50] sm:$0xff]
        %v842 = vld [vmem:[#allocation12 + $0x58] sm:$0xff]
        %v843 = vld [vmem:[#allocation12 + $0x60] sm:$0xff]
        %v844 = vld [vmem:[#allocation12 + $0x68] sm:$0xff]
        %v845 = vld [vmem:[#allocation12 + $0x70] sm:$0xff]
        %v846 = vld [vmem:[#allocation12 + $0x78] sm:$0xff]
        %v847 = vld [vmem:[#allocation12 + $0x80] sm:$0xff]
        %v848 = vld [vmem:[#allocation12 + $0x88] sm:$0xff]
        %v849 = vld [vmem:[#allocation12 + $0x90] sm:$0xff]
        %v850 = vld [vmem:[#allocation12 + $0x98] sm:$0xff]
        %v851 = vld [vmem:[#allocation12 + $0xa0] sm:$0xff]
        %v852 = vld [vmem:[#allocation12 + $0xa8] sm:$0xff]
        %v853 = vld [vmem:[#allocation12 + $0xb0] sm:$0xff]
        %v854 = vld [vmem:[#allocation12 + $0xb8] sm:$0xff]
        %v855 = vld [vmem:[#allocation12 + $0xc0] sm:$0xff]
        %v856 = vld [vmem:[#allocation12 + $0xc8] sm:$0xff]
        %v857 = vld [vmem:[#allocation12 + $0xd0] sm:$0xff]
        %v858 = vld [vmem:[#allocation12 + $0xd8] sm:$0xff]
        %v859 = vld [vmem:[#allocation12 + $0xe0] sm:$0xff]
        %v860 = vld [vmem:[#allocation12 + $0xe8] sm:$0xff]
        %v861 = vld [vmem:[#allocation12 + $0xf0] sm:$0xff]
        %v862 = vld [vmem:[#allocation12 + $0xf8] sm:$0xff]
        %v863 = vpack.c.bf16 %v829, %v829
        %v864 = vpack.c.bf16 %v830, %v830
        %v865 = vpack.c.bf16 %v832, %v831
        %v866 = vpack.c.bf16 %v834, %v833
        %v867 = vpack.c.bf16 %v836, %v835
        %v868 = vpack.c.bf16 %v838, %v837
        %v869 = vpack.c.bf16 %v840, %v839
        %v870 = vpack.c.bf16 %v842, %v841
        %v871 = vpack.c.bf16 %v844, %v843
        %v872 = vpack.c.bf16 %v846, %v845
        %v873 = vpack.c.bf16 %v848, %v847
        %v874 = vpack.c.bf16 %v850, %v849
        %v875 = vpack.c.bf16 %v852, %v851
        %v876 = vpack.c.bf16 %v854, %v853
        %v877 = vpack.c.bf16 %v856, %v855
        %v878 = vpack.c.bf16 %v858, %v857
        %v879 = vpack.c.bf16 %v860, %v859
        %v880 = vpack.c.bf16 %v862, %v861
        %v881 = vld [vmem:[#allocation14] sm:$0x1]
        %v883 = vlaneseq
        %v884 = vshrl.u32 %v883, 7
        %v885 = vsub.s32 0, %v884
        %v886 = vrot.slane %v881, %v885
        %888 = vmatprep.subr.bf16.mxu0 0
        %889 = vmatpush1.bf16.msra.mxu0 %v865
        %890 = vmatprep.subr.bf16.mxu0 0
        %891 = vmatpush1.bf16.msra.mxu0 %v866
        %892 = vmatprep.subr.bf16.mxu0 0
        %893 = vmatpush1.bf16.msra.mxu0 %v867
        %894 = vmatprep.subr.bf16.mxu0 0
        %895 = vmatpush1.bf16.msra.mxu0 %v868
        %896 = vmatprep.subr.bf16.mxu0 0
        %897 = vmatpush1.bf16.msra.mxu0 %v869
        %898 = vmatprep.subr.bf16.mxu0 0
        %899 = vmatpush1.bf16.msra.mxu0 %v870
        %900 = vmatprep.subr.bf16.mxu0 0
        %901 = vmatpush1.bf16.msra.mxu0 %v871
        %902 = vmatprep.subr.bf16.mxu0 0
        %903 = vmatpush1.bf16.msra.mxu0 %v872
        %904 = vmatprep.subr.bf16.mxu0 0
        %905 = vmatpush1.bf16.msra.mxu0 %v873
        %906 = vmatprep.subr.bf16.mxu0 0
        %907 = vmatpush1.bf16.msra.mxu0 %v874
        %908 = vmatprep.subr.bf16.mxu0 0
        %909 = vmatpush1.bf16.msra.mxu0 %v875
        %910 = vmatprep.subr.bf16.mxu0 0
        %911 = vmatpush1.bf16.msra.mxu0 %v876
        %912 = vmatprep.subr.bf16.mxu0 0
        %913 = vmatpush1.bf16.msra.mxu0 %v877
        %914 = vmatprep.subr.bf16.mxu0 0
        %915 = vmatpush1.bf16.msra.mxu0 %v878
        %916 = vmatprep.subr.bf16.mxu0 0
        %917 = vmatpush1.bf16.msra.mxu0 %v879
        %918 = vmatprep.subr.bf16.mxu0 0
        %919 = vmatpush1.bf16.msra.mxu0 %v880
        %920 = vmatprep.mubr.bf16.mxu0 %v864
        %921 = vmatmul.mubr.bf16.gmra.mrb[0].mxu0 %v863
        %v922 = vpop.f32.mrb[0].mxu0
        %v923 = vadd.f32 %v886, %v922
        %v924 = vpop.f32.mrb[0].mxu0
        %v925 = vpop.f32.mrb[0].mxu0
        %v926 = vpop.f32.mrb[0].mxu0
        %927 = vdwg.mxu0
        %vm928 = vcmp.gt.f32.partialorder %v923, 0.0
        %v929 = vmul.f32 %v923, 1.442695
        %v930 = vpow.pop %v929
        %v931 = vsub.f32 %v930, 1.0
        %v932 = vsel %vm928, %v923, %v931
        %933 = vst [vmem:[#allocation2] sm:$0xff] %v932
        %v934 = vld [vmem:[#allocation2] ss:$2 sm:$0xf]
        %v935 = vld [vmem:[%s715] ss:$2 sm:$0xf]
        %v936 = vld [vmem:[#allocation15] sm:$0xff]
        %v937 = vld [vmem:[#allocation15 + $0x8] sm:$0xff]
        %v938 = vld [vmem:[#allocation15 + $0x10] sm:$0xff]
        %v939 = vld [vmem:[#allocation15 + $0x18] sm:$0xff]
        %v940 = vld [vmem:[#allocation15 + $0x20] sm:$0xff]
        %v941 = vld [vmem:[#allocation15 + $0x28] sm:$0xff]
        %v942 = vld [vmem:[#allocation15 + $0x30] sm:$0xff]
        %v943 = vld [vmem:[#allocation15 + $0x38] sm:$0xff]
        %v944 = vld [vmem:[#allocation15 + $0x40] sm:$0xff]
        %v945 = vld [vmem:[#allocation15 + $0x48] sm:$0xff]
        %v946 = vld [vmem:[#allocation15 + $0x50] sm:$0xff]
        %v947 = vld [vmem:[#allocation15 + $0x58] sm:$0xff]
        %v948 = vld [vmem:[#allocation15 + $0x60] sm:$0xff]
        %v949 = vld [vmem:[#allocation15 + $0x68] sm:$0xff]
        %v950 = vld [vmem:[#allocation15 + $0x70] sm:$0xff]
        %v951 = vld [vmem:[#allocation15 + $0x78] sm:$0xff]
        %v952 = vld [vmem:[#allocation15 + $0x80] sm:$0xff]
        %v953 = vld [vmem:[#allocation15 + $0x88] sm:$0xff]
        %v954 = vld [vmem:[#allocation15 + $0x90] sm:$0xff]
        %v955 = vld [vmem:[#allocation15 + $0x98] sm:$0xff]
        %v956 = vld [vmem:[#allocation15 + $0xa0] sm:$0xff]
        %v957 = vld [vmem:[#allocation15 + $0xa8] sm:$0xff]
        %v958 = vld [vmem:[#allocation15 + $0xb0] sm:$0xff]
        %v959 = vld [vmem:[#allocation15 + $0xb8] sm:$0xff]
        %v960 = vld [vmem:[#allocation15 + $0xc0] sm:$0xff]
        %v961 = vld [vmem:[#allocation15 + $0xc8] sm:$0xff]
        %v962 = vld [vmem:[#allocation15 + $0xd0] sm:$0xff]
        %v963 = vld [vmem:[#allocation15 + $0xd8] sm:$0xff]
        %v964 = vld [vmem:[#allocation15 + $0xe0] sm:$0xff]
        %v965 = vld [vmem:[#allocation15 + $0xe8] sm:$0xff]
        %v966 = vld [vmem:[#allocation15 + $0xf0] sm:$0xff]
        %v967 = vld [vmem:[#allocation15 + $0xf8] sm:$0xff]
        %v968 = vpack.c.bf16 %v934, %v934
        %v969 = vpack.c.bf16 %v935, %v935
        %v970 = vpack.c.bf16 %v937, %v936
        %v971 = vpack.c.bf16 %v939, %v938
        %v972 = vpack.c.bf16 %v941, %v940
        %v973 = vpack.c.bf16 %v943, %v942
        %v974 = vpack.c.bf16 %v945, %v944
        %v975 = vpack.c.bf16 %v947, %v946
        %v976 = vpack.c.bf16 %v949, %v948
        %v977 = vpack.c.bf16 %v951, %v950
        %v978 = vpack.c.bf16 %v953, %v952
        %v979 = vpack.c.bf16 %v955, %v954
        %v980 = vpack.c.bf16 %v957, %v956
        %v981 = vpack.c.bf16 %v959, %v958
        %v982 = vpack.c.bf16 %v961, %v960
        %v983 = vpack.c.bf16 %v963, %v962
        %v984 = vpack.c.bf16 %v965, %v964
        %v985 = vpack.c.bf16 %v967, %v966
        %v986 = vld [vmem:[#allocation17] sm:$0x1]
        %v988 = vlaneseq
        %v989 = vshrl.u32 %v988, 7
        %v990 = vsub.s32 0, %v989
        %v991 = vrot.slane %v986, %v990
        %993 = vmatprep.subr.bf16.mxu0 0
        %994 = vmatpush1.bf16.msra.mxu0 %v970
        %995 = vmatprep.subr.bf16.mxu0 0
        %996 = vmatpush1.bf16.msra.mxu0 %v971
        %997 = vmatprep.subr.bf16.mxu0 0
        %998 = vmatpush1.bf16.msra.mxu0 %v972
        %999 = vmatprep.subr.bf16.mxu0 0
        %1000 = vmatpush1.bf16.msra.mxu0 %v973
        %1001 = vmatprep.subr.bf16.mxu0 0
        %1002 = vmatpush1.bf16.msra.mxu0 %v974
        %1003 = vmatprep.subr.bf16.mxu0 0
        %1004 = vmatpush1.bf16.msra.mxu0 %v975
        %1005 = vmatprep.subr.bf16.mxu0 0
        %1006 = vmatpush1.bf16.msra.mxu0 %v976
        %1007 = vmatprep.subr.bf16.mxu0 0
        %1008 = vmatpush1.bf16.msra.mxu0 %v977
        %1009 = vmatprep.subr.bf16.mxu0 0
        %1010 = vmatpush1.bf16.msra.mxu0 %v978
        %1011 = vmatprep.subr.bf16.mxu0 0
        %1012 = vmatpush1.bf16.msra.mxu0 %v979
        %1013 = vmatprep.subr.bf16.mxu0 0
        %1014 = vmatpush1.bf16.msra.mxu0 %v980
        %1015 = vmatprep.subr.bf16.mxu0 0
        %1016 = vmatpush1.bf16.msra.mxu0 %v981
        %1017 = vmatprep.subr.bf16.mxu0 0
        %1018 = vmatpush1.bf16.msra.mxu0 %v982
        %1019 = vmatprep.subr.bf16.mxu0 0
        %1020 = vmatpush1.bf16.msra.mxu0 %v983
        %1021 = vmatprep.subr.bf16.mxu0 0
        %1022 = vmatpush1.bf16.msra.mxu0 %v984
        %1023 = vmatprep.subr.bf16.mxu0 0
        %1024 = vmatpush1.bf16.msra.mxu0 %v985
        %1025 = vmatprep.mubr.bf16.mxu0 %v969
        %1026 = vmatmul.mubr.bf16.gmra.mrb[0].mxu0 %v968
        %v1027 = vpop.f32.mrb[0].mxu0
        %v1028 = vadd.f32 %v991, %v1027
        %v1029 = vpop.f32.mrb[0].mxu0
        %v1030 = vpop.f32.mrb[0].mxu0
        %v1031 = vpop.f32.mrb[0].mxu0
        %1032 = vdwg.mxu0
        %vm1033 = vcmp.gt.f32.partialorder %v1028, 0.0
        %v1034 = vmul.f32 %v1028, 1.442695
        %v1035 = vpow.pop %v1034
        %v1036 = vsub.f32 %v1035, 1.0
        %v1037 = vsel %vm1033, %v1028, %v1036
        %1038 = vst [vmem:[#allocation2] sm:$0xf] %v1037
        %v1039 = vld [vmem:[#allocation18] sm:$0xff]
        %v1040 = vld [vmem:[#allocation18 + $0x8] sm:$0xff]
        %v1041 = vld [vmem:[#allocation18 + $0x10] sm:$0xff]
        %v1042 = vld [vmem:[#allocation18 + $0x18] sm:$0xff]
        %v1043 = vld [vmem:[#allocation18 + $0x20] sm:$0xff]
        %v1044 = vld [vmem:[#allocation18 + $0x28] sm:$0xff]
        %v1045 = vld [vmem:[#allocation18 + $0x30] sm:$0xff]
        %v1046 = vld [vmem:[#allocation18 + $0x38] sm:$0xff]
        %v1047 = vld [vmem:[#allocation18 + $0x40] sm:$0xff]
        %v1048 = vld [vmem:[#allocation18 + $0x48] sm:$0xff]
        %v1049 = vld [vmem:[#allocation18 + $0x50] sm:$0xff]
        %v1050 = vld [vmem:[#allocation18 + $0x58] sm:$0xff]
        %v1051 = vld [vmem:[#allocation18 + $0x60] sm:$0xff]
        %v1052 = vld [vmem:[#allocation18 + $0x68] sm:$0xff]
        %v1053 = vld [vmem:[#allocation18 + $0x70] sm:$0xff]
        %v1054 = vld [vmem:[#allocation18 + $0x78] sm:$0xff]
        %v1055 = vpack.c.bf16 %v826, %v825
        %v1056 = vpack.c.bf16 %v1037, %v932
        %v1057 = vpack.c.bf16 %v1040, %v1039
        %v1058 = vpack.c.bf16 %v1042, %v1041
        %v1059 = vpack.c.bf16 %v1044, %v1043
        %v1060 = vpack.c.bf16 %v1046, %v1045
        %v1061 = vpack.c.bf16 %v1048, %v1047
        %v1062 = vpack.c.bf16 %v1050, %v1049
        %v1063 = vpack.c.bf16 %v1052, %v1051
        %v1064 = vpack.c.bf16 %v1054, %v1053
        %v1065 = vld [vmem:[#allocation20] sm:$0x1]
        %v1067 = vlaneseq
        %v1068 = vshrl.u32 %v1067, 7
        %v1069 = vsub.s32 0, %v1068
        %v1070 = vrot.slane %v1065, %v1069
        %1072 = vmatprep.subr.bf16.mxu0 0
        %1073 = vmatpush1.bf16.msra.mxu0 %v1057
        %1074 = vmatprep.subr.bf16.mxu0 0
        %1075 = vmatpush1.bf16.msra.mxu0 %v1058
        %1076 = vmatprep.subr.bf16.mxu0 0
        %1077 = vmatpush1.bf16.msra.mxu0 %v1059
        %1078 = vmatprep.subr.bf16.mxu0 0
        %1079 = vmatpush1.bf16.msra.mxu0 %v1060
        %1080 = vmatprep.subr.bf16.mxu0 0
        %1081 = vmatpush1.bf16.msra.mxu0 %v1061
        %1082 = vmatprep.subr.bf16.mxu0 0
        %1083 = vmatpush1.bf16.msra.mxu0 %v1062
        %1084 = vmatprep.subr.bf16.mxu0 0
        %1085 = vmatpush1.bf16.msra.mxu0 %v1063
        %1086 = vmatprep.subr.bf16.mxu0 0
        %1087 = vmatpush1.bf16.msra.mxu0 %v1064
        %1088 = vmatprep.subr.bf16.mxu0 0
        %1089 = vmatpush1.bf16.msra.mxu0 0
        %1090 = vmatprep.subr.bf16.mxu0 0
        %1091 = vmatpush1.bf16.msra.mxu0 0
        %1092 = vmatprep.subr.bf16.mxu0 0
        %1093 = vmatpush1.bf16.msra.mxu0 0
        %1094 = vmatprep.subr.bf16.mxu0 0
        %1095 = vmatpush1.bf16.msra.mxu0 0
        %1096 = vmatprep.subr.bf16.mxu0 0
        %1097 = vmatpush1.bf16.msra.mxu0 0
        %1098 = vmatprep.subr.bf16.mxu0 0
        %1099 = vmatpush1.bf16.msra.mxu0 0
        %1100 = vmatprep.subr.bf16.mxu0 0
        %1101 = vmatpush1.bf16.msra.mxu0 0
        %1102 = vmatprep.subr.bf16.mxu0 0
        %1103 = vmatpush1.bf16.msra.mxu0 0
        %1104 = vmatprep.mubr.bf16.mxu0 0
        %1105 = vmatmul.mubr.bf16.gmra.mrb[0].mxu0 %v1055
        %v1106 = vpop.f32.mrb[0].mxu0
        %v1107 = vadd.f32 %v1070, %v1106
        %v1108 = vpop.f32.mrb[0].mxu0
        %v1109 = vpop.f32.mrb[0].mxu0
        %v1110 = vadd.f32 %v1070, %v1109
        %v1111 = vpop.f32.mrb[0].mxu0
        %1112 = vmatprep.mubr.bf16.mxu0 0
        %1113 = vmatmul.mubr.bf16.gmra.mrb[0].mxu0 %v1056
        %v1114 = vpop.f32.mrb[0].mxu0
        %v1115 = vadd.f32 %v1070, %v1114
        %v1116 = vpop.f32.mrb[0].mxu0
        %v1117 = vpop.f32.mrb[0].mxu0
        %v1118 = vadd.f32 %v1070, %v1117
        %v1119 = vpop.f32.mrb[0].mxu0
        %1120 = vdwg.mxu0
        %1121 = vadd.xlane.f32.xlu0 %v620
        %v1122 = vpop.xlane.xlu0 %1121
        %1123 = vadd.xlane.f32.xlu0 %v621
        %v1124 = vpop.xlane.xlu0 %1123
        %1125 = vadd.xlane.f32.xlu0 %v622
        %v1126 = vpop.xlane.xlu0 %1125
        %1127 = vadd.xlane.f32.xlu0 %v623
        %v1128 = vpop.xlane.xlu0 %1127
        %v1129 = vrcp.pop 128.0
        %v1130 = vmul.f32 %v1122, %v1129
        %v1131 = vmul.f32 %v1124, %v1129
        %v1132 = vmul.f32 %v1126, %v1129
        %v1133 = vmul.f32 %v1128, %v1129
        %v1134 = vsub.f32 %v620, %v1130
        %v1135 = vsub.f32 %v621, %v1131
        %v1136 = vsub.f32 %v622, %v1132
        %v1137 = vsub.f32 %v623, %v1133
        %v1138 = vmul.f32 %v1134, %v1134
        %v1139 = vmul.f32 %v1135, %v1135
        %v1140 = vmul.f32 %v1136, %v1136
        %v1141 = vmul.f32 %v1137, %v1137
        %1142 = vadd.xlane.f32.xlu0 %v1138
        %v1143 = vpop.xlane.xlu0 %1142
        %1144 = vadd.xlane.f32.xlu0 %v1139
        %v1145 = vpop.xlane.xlu0 %1144
        %1146 = vadd.xlane.f32.xlu0 %v1140
        %v1147 = vpop.xlane.xlu0 %1146
        %1148 = vadd.xlane.f32.xlu0 %v1141
        %v1149 = vpop.xlane.xlu0 %1148
        %v1150 = vmul.f32 %v1143, %v1129
        %v1151 = vmul.f32 %v1145, %v1129
        %v1152 = vmul.f32 %v1147, %v1129
        %v1153 = vmul.f32 %v1149, %v1129
        %v1154 = vadd.f32 %v1150, 1e-05
        %v1155 = vadd.f32 %v1151, 1e-05
        %v1156 = vadd.f32 %v1152, 1e-05
        %v1157 = vadd.f32 %v1153, 1e-05
        %v1158 = vrsqrt.pop %v1154
        %v1159 = vrsqrt.pop %v1155
        %v1160 = vrsqrt.pop %v1156
        %v1161 = vrsqrt.pop %v1157
        %v1162 = vmul.f32 %v1134, %v1158
        %v1163 = vmul.f32 %v1135, %v1159
        %v1164 = vmul.f32 %v1136, %v1160
        %v1165 = vmul.f32 %v1137, %v1161
        %v1167 = vlaneseq
        %v1168 = vshrl.u32 %v1167, 7
        %v1169 = vsub.s32 0, %v1168
        %v1170 = vrot.slane %v624, %v1169
        %v1172 = vmul.f32 %v1162, %v1170
        %v1173 = vmul.f32 %v1163, %v1170
        %v1174 = vmul.f32 %v1164, %v1170
        %v1175 = vmul.f32 %v1165, %v1170
        %v1177 = vlaneseq
        %v1178 = vshrl.u32 %v1177, 7
        %v1179 = vsub.s32 0, %v1178
        %v1180 = vrot.slane %v625, %v1179
        %v1182 = vadd.f32 %v1172, %v1180
        %v1183 = vadd.f32 %v1173, %v1180
        %v1184 = vadd.f32 %v1174, %v1180
        %v1185 = vadd.f32 %v1175, %v1180
        %1186 = vst [vmem:[%s618] sm:$0xff] %v1182
        %1187 = vst [vmem:[%s618 + $0x8] sm:$0xff] %v1183
        %1188 = vst [vmem:[%s618 + $0x10] sm:$0xff] %v1184
        %1189 = vst [vmem:[%s618 + $0x18] sm:$0xff] %v1185
        %1190 = vadd.xlane.f32.xlu0 %v1107
        %v1191 = vpop.xlane.xlu0 %1190
        %1192 = vadd.xlane.f32.xlu0 %v1110
        %v1193 = vpop.xlane.xlu0 %1192
        %1194 = vadd.xlane.f32.xlu0 %v1115
        %v1195 = vpop.xlane.xlu0 %1194
        %vm1196 = vcmask 1043456
        %v1197 = vsel %vm1196, %v1118, 0.0
        %1198 = vadd.xlane.f32.xlu0 %v1197
        %v1199 = vpop.xlane.xlu0 %1198
        %v1200 = vmul.f32 %v1191, %v1129
        %v1201 = vmul.f32 %v1193, %v1129
        %v1202 = vmul.f32 %v1195, %v1129
        %v1203 = vmul.f32 %v1199, %v1129
        %v1204 = vsub.f32 %v1107, %v1200
        %v1205 = vsub.f32 %v1110, %v1201
        %v1206 = vsub.f32 %v1115, %v1202
        %v1207 = vsub.f32 %v1118, %v1203
        %v1208 = vmul.f32 %v1204, %v1204
        %v1209 = vmul.f32 %v1205, %v1205
        %v1210 = vmul.f32 %v1206, %v1206
        %v1211 = vmul.f32 %v1207, %v1207
        %1212 = vadd.xlane.f32.xlu0 %v1208
        %v1213 = vpop.xlane.xlu0 %1212
        %1214 = vadd.xlane.f32.xlu0 %v1209
        %v1215 = vpop.xlane.xlu0 %1214
        %1216 = vadd.xlane.f32.xlu0 %v1210
        %v1217 = vpop.xlane.xlu0 %1216
        %v1218 = vsel %vm1196, %v1211, 0.0
        %1219 = vadd.xlane.f32.xlu0 %v1218
        %v1220 = vpop.xlane.xlu0 %1219
        %v1221 = vmul.f32 %v1213, %v1129
        %v1222 = vmul.f32 %v1215, %v1129
        %v1223 = vmul.f32 %v1217, %v1129
        %v1224 = vmul.f32 %v1220, %v1129
        %v1225 = vadd.f32 %v1221, 1e-05
        %v1226 = vadd.f32 %v1222, 1e-05
        %v1227 = vadd.f32 %v1223, 1e-05
        %v1228 = vadd.f32 %v1224, 1e-05
        %v1229 = vrsqrt.pop %v1225
        %v1230 = vrsqrt.pop %v1226
        %v1231 = vrsqrt.pop %v1227
        %v1232 = vrsqrt.pop %v1228
        %v1233 = vmul.f32 %v1204, %v1229
        %v1234 = vmul.f32 %v1205, %v1230
        %v1235 = vmul.f32 %v1206, %v1231
        %v1236 = vmul.f32 %v1207, %v1232
        %v1237 = vmul.f32 %v1233, %v1170
        %v1238 = vmul.f32 %v1234, %v1170
        %v1239 = vmul.f32 %v1235, %v1170
        %v1240 = vmul.f32 %v1236, %v1170
        %v1241 = vadd.f32 %v1237, %v1180
        %v1242 = vadd.f32 %v1238, %v1180
        %v1243 = vadd.f32 %v1239, %v1180
        %v1244 = vadd.f32 %v1240, %v1180
        %1245 = vst [vmem:[%s618 + $0x20] sm:$0xff] %v1241
        %1246 = vst [vmem:[%s618 + $0x28] sm:$0xff] %v1242
        %1247 = vst [vmem:[%s618 + $0x30] sm:$0xff] %v1243
        %1248 = vst [vmem:[%s618 + $0x38] sm:$0xf] %v1244
        %s1249 = sand.u32 %s322, 1
        %s1250 = scalar_lea.sflag [#allocation5], %s1249
        %s1251 = sand.u32 %s322, 1
        %s1252 = smul.addr %s1251, 64
        %s1253 = scalar_lea.vmem [#allocation24], %s1252
        // Predicated region
        $region125: #{tpu_custom_call.1} parent=71 // pred_check
          %p1254 = pneg %p332
        $region126: #{tpu_custom_call.1} parent=71 // pred_check_branch
          %1256 = sbr.rel (%p1254) target = $region128
        $region127: #{tpu_custom_call.1} parent=71 // pred_region
          %s1258 = ssub.s32 1024, 1024
          %1259 = vsyncadd %s1250, %s1258
          %s1260 = smul.addr %s36, 8
          %s1261 = smul.addr %s1260, 128
          %s1262 = scalar_lea.hbm %s13, %s1261
          %s1263 = sshll.u32 %s1253, 4
          %s1264 = int_to_ptr.vmem [resolvable:$true] %s1263
          %1269 = dma.vmem_to_hbm [thread:$0]  %s1264, 1024, %s1262, %s1250, 128, 128, 8
        $region128: #{tpu_custom_call.1} parent=71 // pred_fallthru
          _
      $region72: #{tpu_custom_call.1} parent=5 // pred_fallthru
        _
      %p1270 = scmp.le.s32.totalorder 2, %s31
      // Predicated region
      $region129: #{tpu_custom_call.1} parent=5 // pred_check
        %p1271 = pneg %p1270
      $region130: #{tpu_custom_call.1} parent=5 // pred_check_branch
        %1273 = sbr.rel (%p1271) target = $region132
      $region131: #{tpu_custom_call.1} parent=5 // pred_region
        %s1274 = ssub.s32 %s31, 2
        // Predicated region
        $region133: #{tpu_custom_call.1} parent=131 // pred_check
          %p1275 = pneg %p338
        $region134: #{tpu_custom_call.1} parent=131 // pred_check_branch
          %1277 = sbr.rel (%p1275) target = $region136
        $region135: #{tpu_custom_call.1} parent=131 // pred_region
          %s1278 = sand.u32 %s323, 1
          %s1279 = scalar_lea.sflag [#allocation5], %s1278
          %s1280 = sand.u32 %s323, 1
          %s1281 = smul.addr %s1280, 64
          %s1282 = scalar_lea.vmem [#allocation24], %s1281
          %1283 = dma.done %s1279, 1024
        $region136: #{tpu_custom_call.1} parent=131 // pred_fallthru
          _
      $region132: #{tpu_custom_call.1} parent=5 // pred_fallthru
        _
    $region6: #{tpu_custom_call.1} parent=1 // loop_footer
      %s35 = sadd.s32 1, %s31
    $region7: #{tpu_custom_call.1} parent=1 // loop_footer_branch
      %30 = sbr.rel target = $region3
    $region8: #{tpu_custom_call.1} parent=1 // loop_exit
      _
    %1284 = vsyncpa [#allocation4], 1
    %s1285 = scalar_lea.sflag [#allocation4], 1
    %1286 = vsyncpa %s1285, 1
    %1287 = vsyncpa [#allocation7], 1
    %1288 = vsyncpa [#allocation10], 1
    %1289 = vsyncpa [#allocation13], 1
    %1290 = vsyncpa [#allocation16], 1
    %1291 = vsyncpa [#allocation19], 1
    %1292 = vsyncpa [#allocation22], 1
    %1293 = vsyncpa [#allocation5], 1
    %s1294 = scalar_lea.sflag [#allocation5], 1
    %1295 = vsyncpa %s1294, 1

</llo_original>
